<compile_context>
chip_gen: v7x
topology: tpu7x:2x2x1
jax: 0.10.0
libtpu: 0.0.40
codegen_flags: <defaults>
</compile_context>

<pallas_src>
import jax
import jax.numpy as jnp
from jax.experimental import pallas as pl
from jax.experimental.pallas import tpu as pltpu

# ----------------------- problem sizes (small, synthetic) -----------------------
B = 2                 # batch
N = 12                # total tokens (dual stream)
D = 32                # embedding dim
H = 4                 # num_heads
HD = D // H           # head dim
TOKENS_TO_DROP = 4    # tokens dropped from the query stream
NS = N - TOKENS_TO_DROP
SCALE = HD ** -0.5


# --------------------------------- kernel ---------------------------------------
def attn_kernel(x_ref, wqkv_ref, wproj_ref, bproj_ref, out_ref):
    # x_ref: (B*N, D) — batch folded into the sublane axis.
    x = x_ref[...].astype(jnp.float32)
    wqkv = wqkv_ref[...]                                  # (D, 3D)  columns: q|k|v
    wproj = wproj_ref[...]                                # (D, D)   pre-transposed
    bproj = bproj_ref[...]                                # (1, D)

    # One fused projection matmul for the whole batch (SCALE already folded into
    # the q columns of wqkv).
    qkv = jnp.dot(x, wqkv, preferred_element_type=jnp.float32)   # (B*N, 3D)

    batch_outs = []
    for b in range(B):                                    # static unroll over batch
        r0 = b * N
        qb = qkv[r0:r0 + N, 0:D]                          # (N, D), already scaled
        kb = qkv[r0:r0 + N, D:2 * D]                      # (N, D)
        vb = qkv[r0:r0 + N, 2 * D:3 * D]                  # (N, D)

        # Per-head attention; each head's output is folded straight into the
        # output projection through an 8-aligned sublane slice of wproj, so no
        # VMEM scratch / concatenate is needed.
        acc = jnp.zeros((N, D), jnp.float32)
        for h in range(H):                                # static unroll over heads
            lo = h * HD
            qh = qb[:, lo:lo + HD]                        # (N, HD)
            kh = kb[:, lo:lo + HD]                        # (N, HD)
            vh = vb[:, lo:lo + HD]                        # (N, HD)
            s = jax.lax.dot_general(qh, kh, (((1,), (1,)), ((), ())),
                                    preferred_element_type=jnp.float32)  # (N, N)
            s = s - jnp.max(s, axis=-1, keepdims=True)
            p = jnp.exp(s)
            p = p * pl.reciprocal(jnp.sum(p, axis=-1, keepdims=True), approx=True)
            oh = jnp.dot(p, vh, preferred_element_type=jnp.float32)      # (N, HD)
            acc = acc + jnp.dot(oh, wproj[lo:lo + HD, :],
                                preferred_element_type=jnp.float32)      # (N, D)

        out_b = acc + bproj                               # (N, D)
        batch_outs.append(out_b[TOKENS_TO_DROP:, :])      # (NS, D) — single row slice

    # Single store of the whole output slab.
    out = jnp.concatenate(batch_outs, axis=0)             # (B*NS, D)
    out_ref[...] = out.astype(out_ref.dtype)


# --------------------------------- wrapper ---------------------------------------
def make_dual_stream_to_single_stream_attention(wq, wkv, wproj, bproj):
    """One-time (host-side) weight prep; returns a jitted forward fn of x.

    wq: (D, D), wkv: (2D, D), wproj: (D, D), bproj: (D,)  (PyTorch (out, in) layout).
    """
    # Hoisted weight prep: scale fold + kv split + qkv fuse + transpose + bias reshape.
    wqkv = jnp.concatenate([wq * SCALE, wkv[:D], wkv[D:]], axis=0).T     # (D, 3D)
    wproj_t = wproj.T                                                    # (D, D)
    bproj2d = bproj.reshape(1, D)                                        # (1, D)

    # No grid: single step, whole arrays resident in VMEM (total footprint ~20 KiB).
    kernel_call = pl.pallas_call(
        attn_kernel,
        out_shape=jax.ShapeDtypeStruct((B * NS, D), jnp.float32),
        in_specs=[pl.BlockSpec(memory_space=pltpu.MemorySpace.VMEM)] * 4,
        out_specs=pl.BlockSpec(memory_space=pltpu.MemorySpace.VMEM),
    )

    @jax.jit
    def forward(x):                                       # x: (B, N, D)
        out = kernel_call(x.reshape(B * N, D), wqkv, wproj_t, bproj2d)
        return out.reshape(B, NS, D)

    return forward


# ------------------------------ pure-JAX reference --------------------------------
def reference(x, wq, wkv, wproj, bproj):
    xs = x[:, TOKENS_TO_DROP:, :]
    q = xs @ wq.T
    kv = x @ wkv.T
    k, v = kv[..., :D], kv[..., D:]
    qh = q.reshape(B, NS, H, HD).transpose(0, 2, 1, 3)
    kh = k.reshape(B, N, H, HD).transpose(0, 2, 1, 3)
    vh = v.reshape(B, N, H, HD).transpose(0, 2, 1, 3)
    s = (qh * SCALE) @ kh.transpose(0, 1, 3, 2)
    p = jax.nn.softmax(s, axis=-1)
    o = (p @ vh).transpose(0, 2, 1, 3).reshape(B, NS, D)
    return o @ wproj.T + bproj


# ------------------------------------ main -----------------------------------------
if __name__ == "__main__":
    key = jax.random.PRNGKey(0)
    keys = jax.random.split(key, 5)

    x = jax.random.normal(keys[0], (B, N, D), dtype=jnp.float32)

    # Deterministic synthetic parameters (PyTorch Linear weight convention: (out, in)).
    wq    = 0.05 * jax.random.normal(keys[1], (D, D), jnp.float32)       # attn.q.weight   (qkv_bias=False)
    wkv   = 0.05 * jax.random.normal(keys[2], (2 * D, D), jnp.float32)   # attn.kv.weight
    wproj = 0.05 * jax.random.normal(keys[3], (D, D), jnp.float32)       # attn.proj.weight
    bproj = 0.05 * jax.random.normal(keys[4], (D,), jnp.float32)         # attn.proj.bias

    attn_fn = make_dual_stream_to_single_stream_attention(wq, wkv, wproj, bproj)
    out = jax.block_until_ready(attn_fn(x))

    ref = reference(x, wq, wkv, wproj, bproj)
    assert out.shape == (B, NS, D), out.shape
    # tolerance covers the EUP approximate-reciprocal softmax denominator
    assert jnp.allclose(out, ref, atol=2e-3, rtol=2e-3), \
        f"max abs err {jnp.max(jnp.abs(out - ref))}"

    print("KERNEL_OK")
</pallas_src>

<mosaic_0001>
module attributes {stable_mosaic.version = 11 : i64} {
  func.func @attn_kernel(%arg0: memref<24x32xf32, #tpu.memory_space<vmem>>, %arg1: memref<32x96xf32, #tpu.memory_space<vmem>>, %arg2: memref<32x32xf32, #tpu.memory_space<vmem>>, %arg3: memref<1x32xf32, #tpu.memory_space<vmem>>, %arg4: memref<16x32xf32, #tpu.memory_space<vmem>>) attributes {dimension_semantics = [], scalar_prefetch = 0 : i64, scratch_operands = 0 : i64, tpu.core_type = #tpu.core_type<tc>} {
    %c0 = arith.constant 0 : index
    %c0_0 = arith.constant 0 : index
    %0 = vector.load %arg0[%c0, %c0_0] : memref<24x32xf32, #tpu.memory_space<vmem>>, vector<24x32xf32>
    %c0_1 = arith.constant 0 : index
    %c0_2 = arith.constant 0 : index
    %1 = vector.load %arg1[%c0_1, %c0_2] : memref<32x96xf32, #tpu.memory_space<vmem>>, vector<32x96xf32>
    %c0_3 = arith.constant 0 : index
    %c0_4 = arith.constant 0 : index
    %2 = vector.load %arg2[%c0_3, %c0_4] : memref<32x32xf32, #tpu.memory_space<vmem>>, vector<32x32xf32>
    %c0_5 = arith.constant 0 : index
    %c0_6 = arith.constant 0 : index
    %3 = vector.load %arg3[%c0_5, %c0_6] : memref<1x32xf32, #tpu.memory_space<vmem>>, vector<1x32xf32>
    %cst = arith.constant dense<0.000000e+00> : vector<24x96xf32>
    %4 = tpu.matmul %0, %1, %cst {dimension_numbers = #tpu.dot_dimension_numbers<[1], [0], [0], [1], [0, 0, 1, 1], [], []>} : vector<24x32xf32>, vector<32x96xf32>, vector<24x96xf32> -> vector<24x96xf32>
    %5 = vector.extract_strided_slice %4 {offsets = [0, 0], sizes = [12, 32], strides = [1, 1]} : vector<24x96xf32> to vector<12x32xf32>
    %6 = vector.extract_strided_slice %4 {offsets = [0, 32], sizes = [12, 32], strides = [1, 1]} : vector<24x96xf32> to vector<12x32xf32>
    %7 = vector.extract_strided_slice %4 {offsets = [0, 64], sizes = [12, 32], strides = [1, 1]} : vector<24x96xf32> to vector<12x32xf32>
    %cst_7 = arith.constant 0.000000e+00 : f32
    %8 = vector.broadcast %cst_7 : f32 to vector<12x32xf32>
    %9 = vector.extract_strided_slice %5 {offsets = [0, 0], sizes = [12, 8], strides = [1, 1]} : vector<12x32xf32> to vector<12x8xf32>
    %10 = vector.extract_strided_slice %6 {offsets = [0, 0], sizes = [12, 8], strides = [1, 1]} : vector<12x32xf32> to vector<12x8xf32>
    %11 = vector.extract_strided_slice %7 {offsets = [0, 0], sizes = [12, 8], strides = [1, 1]} : vector<12x32xf32> to vector<12x8xf32>
    %cst_8 = arith.constant dense<0.000000e+00> : vector<12x12xf32>
    %12 = tpu.matmul %9, %10, %cst_8 {dimension_numbers = #tpu.dot_dimension_numbers<[1], [1], [0], [0], [0, 0, 1, 0], [], []>} : vector<12x8xf32>, vector<12x8xf32>, vector<12x12xf32> -> vector<12x12xf32>
    %cst_9 = arith.constant dense<0xFF800000> : vector<12xf32>
    %13 = vector.multi_reduction <maximumf>, %12, %cst_9 [1] : vector<12x12xf32> to vector<12xf32>
    %14 = vector.shape_cast %13 : vector<12xf32> to vector<12x1xf32>
    %15 = vector.broadcast %14 : vector<12x1xf32> to vector<12x12xf32>
    %16 = arith.subf %12, %15 : vector<12x12xf32>
    %17 = math.exp %16 : vector<12x12xf32>
    %cst_10 = arith.constant dense<0.000000e+00> : vector<12xf32>
    %18 = vector.multi_reduction <add>, %17, %cst_10 [1] : vector<12x12xf32> to vector<12xf32>
    %19 = vector.shape_cast %18 : vector<12xf32> to vector<12x1xf32>
    %20 = tpu.reciprocal %19 {approx = true} : vector<12x1xf32> -> vector<12x1xf32>
    %21 = vector.broadcast %20 : vector<12x1xf32> to vector<12x12xf32>
    %22 = arith.mulf %17, %21 : vector<12x12xf32>
    %cst_11 = arith.constant dense<0.000000e+00> : vector<12x8xf32>
    %23 = tpu.matmul %22, %11, %cst_11 {dimension_numbers = #tpu.dot_dimension_numbers<[1], [0], [0], [1], [0, 0, 1, 1], [], []>} : vector<12x12xf32>, vector<12x8xf32>, vector<12x8xf32> -> vector<12x8xf32>
    %24 = vector.extract_strided_slice %2 {offsets = [0, 0], sizes = [8, 32], strides = [1, 1]} : vector<32x32xf32> to vector<8x32xf32>
    %cst_12 = arith.constant dense<0.000000e+00> : vector<12x32xf32>
    %25 = tpu.matmul %23, %24, %cst_12 {dimension_numbers = #tpu.dot_dimension_numbers<[1], [0], [0], [1], [0, 0, 1, 1], [], []>} : vector<12x8xf32>, vector<8x32xf32>, vector<12x32xf32> -> vector<12x32xf32>
    %26 = arith.addf %8, %25 : vector<12x32xf32>
    %27 = vector.extract_strided_slice %5 {offsets = [0, 8], sizes = [12, 8], strides = [1, 1]} : vector<12x32xf32> to vector<12x8xf32>
    %28 = vector.extract_strided_slice %6 {offsets = [0, 8], sizes = [12, 8], strides = [1, 1]} : vector<12x32xf32> to vector<12x8xf32>
    %29 = vector.extract_strided_slice %7 {offsets = [0, 8], sizes = [12, 8], strides = [1, 1]} : vector<12x32xf32> to vector<12x8xf32>
    %cst_13 = arith.constant dense<0.000000e+00> : vector<12x12xf32>
    %30 = tpu.matmul %27, %28, %cst_13 {dimension_numbers = #tpu.dot_dimension_numbers<[1], [1], [0], [0], [0, 0, 1, 0], [], []>} : vector<12x8xf32>, vector<12x8xf32>, vector<12x12xf32> -> vector<12x12xf32>
    %cst_14 = arith.constant dense<0xFF800000> : vector<12xf32>
    %31 = vector.multi_reduction <maximumf>, %30, %cst_14 [1] : vector<12x12xf32> to vector<12xf32>
    %32 = vector.shape_cast %31 : vector<12xf32> to vector<12x1xf32>
    %33 = vector.broadcast %32 : vector<12x1xf32> to vector<12x12xf32>
    %34 = arith.subf %30, %33 : vector<12x12xf32>
    %35 = math.exp %34 : vector<12x12xf32>
    %cst_15 = arith.constant dense<0.000000e+00> : vector<12xf32>
    %36 = vector.multi_reduction <add>, %35, %cst_15 [1] : vector<12x12xf32> to vector<12xf32>
    %37 = vector.shape_cast %36 : vector<12xf32> to vector<12x1xf32>
    %38 = tpu.reciprocal %37 {approx = true} : vector<12x1xf32> -> vector<12x1xf32>
    %39 = vector.broadcast %38 : vector<12x1xf32> to vector<12x12xf32>
    %40 = arith.mulf %35, %39 : vector<12x12xf32>
    %cst_16 = arith.constant dense<0.000000e+00> : vector<12x8xf32>
    %41 = tpu.matmul %40, %29, %cst_16 {dimension_numbers = #tpu.dot_dimension_numbers<[1], [0], [0], [1], [0, 0, 1, 1], [], []>} : vector<12x12xf32>, vector<12x8xf32>, vector<12x8xf32> -> vector<12x8xf32>
    %42 = vector.extract_strided_slice %2 {offsets = [8, 0], sizes = [8, 32], strides = [1, 1]} : vector<32x32xf32> to vector<8x32xf32>
    %cst_17 = arith.constant dense<0.000000e+00> : vector<12x32xf32>
    %43 = tpu.matmul %41, %42, %cst_17 {dimension_numbers = #tpu.dot_dimension_numbers<[1], [0], [0], [1], [0, 0, 1, 1], [], []>} : vector<12x8xf32>, vector<8x32xf32>, vector<12x32xf32> -> vector<12x32xf32>
    %44 = arith.addf %26, %43 : vector<12x32xf32>
    %45 = vector.extract_strided_slice %5 {offsets = [0, 16], sizes = [12, 8], strides = [1, 1]} : vector<12x32xf32> to vector<12x8xf32>
    %46 = vector.extract_strided_slice %6 {offsets = [0, 16], sizes = [12, 8], strides = [1, 1]} : vector<12x32xf32> to vector<12x8xf32>
    %47 = vector.extract_strided_slice %7 {offsets = [0, 16], sizes = [12, 8], strides = [1, 1]} : vector<12x32xf32> to vector<12x8xf32>
    %cst_18 = arith.constant dense<0.000000e+00> : vector<12x12xf32>
    %48 = tpu.matmul %45, %46, %cst_18 {dimension_numbers = #tpu.dot_dimension_numbers<[1], [1], [0], [0], [0, 0, 1, 0], [], []>} : vector<12x8xf32>, vector<12x8xf32>, vector<12x12xf32> -> vector<12x12xf32>
    %cst_19 = arith.constant dense<0xFF800000> : vector<12xf32>
    %49 = vector.multi_reduction <maximumf>, %48, %cst_19 [1] : vector<12x12xf32> to vector<12xf32>
    %50 = vector.shape_cast %49 : vector<12xf32> to vector<12x1xf32>
    %51 = vector.broadcast %50 : vector<12x1xf32> to vector<12x12xf32>
    %52 = arith.subf %48, %51 : vector<12x12xf32>
    %53 = math.exp %52 : vector<12x12xf32>
    %cst_20 = arith.constant dense<0.000000e+00> : vector<12xf32>
    %54 = vector.multi_reduction <add>, %53, %cst_20 [1] : vector<12x12xf32> to vector<12xf32>
    %55 = vector.shape_cast %54 : vector<12xf32> to vector<12x1xf32>
    %56 = tpu.reciprocal %55 {approx = true} : vector<12x1xf32> -> vector<12x1xf32>
    %57 = vector.broadcast %56 : vector<12x1xf32> to vector<12x12xf32>
    %58 = arith.mulf %53, %57 : vector<12x12xf32>
    %cst_21 = arith.constant dense<0.000000e+00> : vector<12x8xf32>
    %59 = tpu.matmul %58, %47, %cst_21 {dimension_numbers = #tpu.dot_dimension_numbers<[1], [0], [0], [1], [0, 0, 1, 1], [], []>} : vector<12x12xf32>, vector<12x8xf32>, vector<12x8xf32> -> vector<12x8xf32>
    %60 = vector.extract_strided_slice %2 {offsets = [16, 0], sizes = [8, 32], strides = [1, 1]} : vector<32x32xf32> to vector<8x32xf32>
    %cst_22 = arith.constant dense<0.000000e+00> : vector<12x32xf32>
    %61 = tpu.matmul %59, %60, %cst_22 {dimension_numbers = #tpu.dot_dimension_numbers<[1], [0], [0], [1], [0, 0, 1, 1], [], []>} : vector<12x8xf32>, vector<8x32xf32>, vector<12x32xf32> -> vector<12x32xf32>
    %62 = arith.addf %44, %61 : vector<12x32xf32>
    %63 = vector.extract_strided_slice %5 {offsets = [0, 24], sizes = [12, 8], strides = [1, 1]} : vector<12x32xf32> to vector<12x8xf32>
    %64 = vector.extract_strided_slice %6 {offsets = [0, 24], sizes = [12, 8], strides = [1, 1]} : vector<12x32xf32> to vector<12x8xf32>
    %65 = vector.extract_strided_slice %7 {offsets = [0, 24], sizes = [12, 8], strides = [1, 1]} : vector<12x32xf32> to vector<12x8xf32>
    %cst_23 = arith.constant dense<0.000000e+00> : vector<12x12xf32>
    %66 = tpu.matmul %63, %64, %cst_23 {dimension_numbers = #tpu.dot_dimension_numbers<[1], [1], [0], [0], [0, 0, 1, 0], [], []>} : vector<12x8xf32>, vector<12x8xf32>, vector<12x12xf32> -> vector<12x12xf32>
    %cst_24 = arith.constant dense<0xFF800000> : vector<12xf32>
    %67 = vector.multi_reduction <maximumf>, %66, %cst_24 [1] : vector<12x12xf32> to vector<12xf32>
    %68 = vector.shape_cast %67 : vector<12xf32> to vector<12x1xf32>
    %69 = vector.broadcast %68 : vector<12x1xf32> to vector<12x12xf32>
    %70 = arith.subf %66, %69 : vector<12x12xf32>
    %71 = math.exp %70 : vector<12x12xf32>
    %cst_25 = arith.constant dense<0.000000e+00> : vector<12xf32>
    %72 = vector.multi_reduction <add>, %71, %cst_25 [1] : vector<12x12xf32> to vector<12xf32>
    %73 = vector.shape_cast %72 : vector<12xf32> to vector<12x1xf32>
    %74 = tpu.reciprocal %73 {approx = true} : vector<12x1xf32> -> vector<12x1xf32>
    %75 = vector.broadcast %74 : vector<12x1xf32> to vector<12x12xf32>
    %76 = arith.mulf %71, %75 : vector<12x12xf32>
    %cst_26 = arith.constant dense<0.000000e+00> : vector<12x8xf32>
    %77 = tpu.matmul %76, %65, %cst_26 {dimension_numbers = #tpu.dot_dimension_numbers<[1], [0], [0], [1], [0, 0, 1, 1], [], []>} : vector<12x12xf32>, vector<12x8xf32>, vector<12x8xf32> -> vector<12x8xf32>
    %78 = vector.extract_strided_slice %2 {offsets = [24, 0], sizes = [8, 32], strides = [1, 1]} : vector<32x32xf32> to vector<8x32xf32>
    %cst_27 = arith.constant dense<0.000000e+00> : vector<12x32xf32>
    %79 = tpu.matmul %77, %78, %cst_27 {dimension_numbers = #tpu.dot_dimension_numbers<[1], [0], [0], [1], [0, 0, 1, 1], [], []>} : vector<12x8xf32>, vector<8x32xf32>, vector<12x32xf32> -> vector<12x32xf32>
    %80 = arith.addf %62, %79 : vector<12x32xf32>
    %81 = vector.broadcast %3 : vector<1x32xf32> to vector<12x32xf32>
    %82 = arith.addf %80, %81 : vector<12x32xf32>
    %83 = vector.extract_strided_slice %82 {offsets = [4, 0], sizes = [8, 32], strides = [1, 1]} : vector<12x32xf32> to vector<8x32xf32>
    %84 = vector.extract_strided_slice %4 {offsets = [12, 0], sizes = [12, 32], strides = [1, 1]} : vector<24x96xf32> to vector<12x32xf32>
    %85 = vector.extract_strided_slice %4 {offsets = [12, 32], sizes = [12, 32], strides = [1, 1]} : vector<24x96xf32> to vector<12x32xf32>
    %86 = vector.extract_strided_slice %4 {offsets = [12, 64], sizes = [12, 32], strides = [1, 1]} : vector<24x96xf32> to vector<12x32xf32>
    %cst_28 = arith.constant 0.000000e+00 : f32
    %87 = vector.broadcast %cst_28 : f32 to vector<12x32xf32>
    %88 = vector.extract_strided_slice %84 {offsets = [0, 0], sizes = [12, 8], strides = [1, 1]} : vector<12x32xf32> to vector<12x8xf32>
    %89 = vector.extract_strided_slice %85 {offsets = [0, 0], sizes = [12, 8], strides = [1, 1]} : vector<12x32xf32> to vector<12x8xf32>
    %90 = vector.extract_strided_slice %86 {offsets = [0, 0], sizes = [12, 8], strides = [1, 1]} : vector<12x32xf32> to vector<12x8xf32>
    %cst_29 = arith.constant dense<0.000000e+00> : vector<12x12xf32>
    %91 = tpu.matmul %88, %89, %cst_29 {dimension_numbers = #tpu.dot_dimension_numbers<[1], [1], [0], [0], [0, 0, 1, 0], [], []>} : vector<12x8xf32>, vector<12x8xf32>, vector<12x12xf32> -> vector<12x12xf32>
    %cst_30 = arith.constant dense<0xFF800000> : vector<12xf32>
    %92 = vector.multi_reduction <maximumf>, %91, %cst_30 [1] : vector<12x12xf32> to vector<12xf32>
    %93 = vector.shape_cast %92 : vector<12xf32> to vector<12x1xf32>
    %94 = vector.broadcast %93 : vector<12x1xf32> to vector<12x12xf32>
    %95 = arith.subf %91, %94 : vector<12x12xf32>
    %96 = math.exp %95 : vector<12x12xf32>
    %cst_31 = arith.constant dense<0.000000e+00> : vector<12xf32>
    %97 = vector.multi_reduction <add>, %96, %cst_31 [1] : vector<12x12xf32> to vector<12xf32>
    %98 = vector.shape_cast %97 : vector<12xf32> to vector<12x1xf32>
    %99 = tpu.reciprocal %98 {approx = true} : vector<12x1xf32> -> vector<12x1xf32>
    %100 = vector.broadcast %99 : vector<12x1xf32> to vector<12x12xf32>
    %101 = arith.mulf %96, %100 : vector<12x12xf32>
    %cst_32 = arith.constant dense<0.000000e+00> : vector<12x8xf32>
    %102 = tpu.matmul %101, %90, %cst_32 {dimension_numbers = #tpu.dot_dimension_numbers<[1], [0], [0], [1], [0, 0, 1, 1], [], []>} : vector<12x12xf32>, vector<12x8xf32>, vector<12x8xf32> -> vector<12x8xf32>
    %103 = vector.extract_strided_slice %2 {offsets = [0, 0], sizes = [8, 32], strides = [1, 1]} : vector<32x32xf32> to vector<8x32xf32>
    %cst_33 = arith.constant dense<0.000000e+00> : vector<12x32xf32>
    %104 = tpu.matmul %102, %103, %cst_33 {dimension_numbers = #tpu.dot_dimension_numbers<[1], [0], [0], [1], [0, 0, 1, 1], [], []>} : vector<12x8xf32>, vector<8x32xf32>, vector<12x32xf32> -> vector<12x32xf32>
    %105 = arith.addf %87, %104 : vector<12x32xf32>
    %106 = vector.extract_strided_slice %84 {offsets = [0, 8], sizes = [12, 8], strides = [1, 1]} : vector<12x32xf32> to vector<12x8xf32>
    %107 = vector.extract_strided_slice %85 {offsets = [0, 8], sizes = [12, 8], strides = [1, 1]} : vector<12x32xf32> to vector<12x8xf32>
    %108 = vector.extract_strided_slice %86 {offsets = [0, 8], sizes = [12, 8], strides = [1, 1]} : vector<12x32xf32> to vector<12x8xf32>
    %cst_34 = arith.constant dense<0.000000e+00> : vector<12x12xf32>
    %109 = tpu.matmul %106, %107, %cst_34 {dimension_numbers = #tpu.dot_dimension_numbers<[1], [1], [0], [0], [0, 0, 1, 0], [], []>} : vector<12x8xf32>, vector<12x8xf32>, vector<12x12xf32> -> vector<12x12xf32>
    %cst_35 = arith.constant dense<0xFF800000> : vector<12xf32>
    %110 = vector.multi_reduction <maximumf>, %109, %cst_35 [1] : vector<12x12xf32> to vector<12xf32>
    %111 = vector.shape_cast %110 : vector<12xf32> to vector<12x1xf32>
    %112 = vector.broadcast %111 : vector<12x1xf32> to vector<12x12xf32>
    %113 = arith.subf %109, %112 : vector<12x12xf32>
    %114 = math.exp %113 : vector<12x12xf32>
    %cst_36 = arith.constant dense<0.000000e+00> : vector<12xf32>
    %115 = vector.multi_reduction <add>, %114, %cst_36 [1] : vector<12x12xf32> to vector<12xf32>
    %116 = vector.shape_cast %115 : vector<12xf32> to vector<12x1xf32>
    %117 = tpu.reciprocal %116 {approx = true} : vector<12x1xf32> -> vector<12x1xf32>
    %118 = vector.broadcast %117 : vector<12x1xf32> to vector<12x12xf32>
    %119 = arith.mulf %114, %118 : vector<12x12xf32>
    %cst_37 = arith.constant dense<0.000000e+00> : vector<12x8xf32>
    %120 = tpu.matmul %119, %108, %cst_37 {dimension_numbers = #tpu.dot_dimension_numbers<[1], [0], [0], [1], [0, 0, 1, 1], [], []>} : vector<12x12xf32>, vector<12x8xf32>, vector<12x8xf32> -> vector<12x8xf32>
    %121 = vector.extract_strided_slice %2 {offsets = [8, 0], sizes = [8, 32], strides = [1, 1]} : vector<32x32xf32> to vector<8x32xf32>
    %cst_38 = arith.constant dense<0.000000e+00> : vector<12x32xf32>
    %122 = tpu.matmul %120, %121, %cst_38 {dimension_numbers = #tpu.dot_dimension_numbers<[1], [0], [0], [1], [0, 0, 1, 1], [], []>} : vector<12x8xf32>, vector<8x32xf32>, vector<12x32xf32> -> vector<12x32xf32>
    %123 = arith.addf %105, %122 : vector<12x32xf32>
    %124 = vector.extract_strided_slice %84 {offsets = [0, 16], sizes = [12, 8], strides = [1, 1]} : vector<12x32xf32> to vector<12x8xf32>
    %125 = vector.extract_strided_slice %85 {offsets = [0, 16], sizes = [12, 8], strides = [1, 1]} : vector<12x32xf32> to vector<12x8xf32>
    %126 = vector.extract_strided_slice %86 {offsets = [0, 16], sizes = [12, 8], strides = [1, 1]} : vector<12x32xf32> to vector<12x8xf32>
    %cst_39 = arith.constant dense<0.000000e+00> : vector<12x12xf32>
    %127 = tpu.matmul %124, %125, %cst_39 {dimension_numbers = #tpu.dot_dimension_numbers<[1], [1], [0], [0], [0, 0, 1, 0], [], []>} : vector<12x8xf32>, vector<12x8xf32>, vector<12x12xf32> -> vector<12x12xf32>
    %cst_40 = arith.constant dense<0xFF800000> : vector<12xf32>
    %128 = vector.multi_reduction <maximumf>, %127, %cst_40 [1] : vector<12x12xf32> to vector<12xf32>
    %129 = vector.shape_cast %128 : vector<12xf32> to vector<12x1xf32>
    %130 = vector.broadcast %129 : vector<12x1xf32> to vector<12x12xf32>
    %131 = arith.subf %127, %130 : vector<12x12xf32>
    %132 = math.exp %131 : vector<12x12xf32>
    %cst_41 = arith.constant dense<0.000000e+00> : vector<12xf32>
    %133 = vector.multi_reduction <add>, %132, %cst_41 [1] : vector<12x12xf32> to vector<12xf32>
    %134 = vector.shape_cast %133 : vector<12xf32> to vector<12x1xf32>
    %135 = tpu.reciprocal %134 {approx = true} : vector<12x1xf32> -> vector<12x1xf32>
    %136 = vector.broadcast %135 : vector<12x1xf32> to vector<12x12xf32>
    %137 = arith.mulf %132, %136 : vector<12x12xf32>
    %cst_42 = arith.constant dense<0.000000e+00> : vector<12x8xf32>
    %138 = tpu.matmul %137, %126, %cst_42 {dimension_numbers = #tpu.dot_dimension_numbers<[1], [0], [0], [1], [0, 0, 1, 1], [], []>} : vector<12x12xf32>, vector<12x8xf32>, vector<12x8xf32> -> vector<12x8xf32>
    %139 = vector.extract_strided_slice %2 {offsets = [16, 0], sizes = [8, 32], strides = [1, 1]} : vector<32x32xf32> to vector<8x32xf32>
    %cst_43 = arith.constant dense<0.000000e+00> : vector<12x32xf32>
    %140 = tpu.matmul %138, %139, %cst_43 {dimension_numbers = #tpu.dot_dimension_numbers<[1], [0], [0], [1], [0, 0, 1, 1], [], []>} : vector<12x8xf32>, vector<8x32xf32>, vector<12x32xf32> -> vector<12x32xf32>
    %141 = arith.addf %123, %140 : vector<12x32xf32>
    %142 = vector.extract_strided_slice %84 {offsets = [0, 24], sizes = [12, 8], strides = [1, 1]} : vector<12x32xf32> to vector<12x8xf32>
    %143 = vector.extract_strided_slice %85 {offsets = [0, 24], sizes = [12, 8], strides = [1, 1]} : vector<12x32xf32> to vector<12x8xf32>
    %144 = vector.extract_strided_slice %86 {offsets = [0, 24], sizes = [12, 8], strides = [1, 1]} : vector<12x32xf32> to vector<12x8xf32>
    %cst_44 = arith.constant dense<0.000000e+00> : vector<12x12xf32>
    %145 = tpu.matmul %142, %143, %cst_44 {dimension_numbers = #tpu.dot_dimension_numbers<[1], [1], [0], [0], [0, 0, 1, 0], [], []>} : vector<12x8xf32>, vector<12x8xf32>, vector<12x12xf32> -> vector<12x12xf32>
    %cst_45 = arith.constant dense<0xFF800000> : vector<12xf32>
    %146 = vector.multi_reduction <maximumf>, %145, %cst_45 [1] : vector<12x12xf32> to vector<12xf32>
    %147 = vector.shape_cast %146 : vector<12xf32> to vector<12x1xf32>
    %148 = vector.broadcast %147 : vector<12x1xf32> to vector<12x12xf32>
    %149 = arith.subf %145, %148 : vector<12x12xf32>
    %150 = math.exp %149 : vector<12x12xf32>
    %cst_46 = arith.constant dense<0.000000e+00> : vector<12xf32>
    %151 = vector.multi_reduction <add>, %150, %cst_46 [1] : vector<12x12xf32> to vector<12xf32>
    %152 = vector.shape_cast %151 : vector<12xf32> to vector<12x1xf32>
    %153 = tpu.reciprocal %152 {approx = true} : vector<12x1xf32> -> vector<12x1xf32>
    %154 = vector.broadcast %153 : vector<12x1xf32> to vector<12x12xf32>
    %155 = arith.mulf %150, %154 : vector<12x12xf32>
    %cst_47 = arith.constant dense<0.000000e+00> : vector<12x8xf32>
    %156 = tpu.matmul %155, %144, %cst_47 {dimension_numbers = #tpu.dot_dimension_numbers<[1], [0], [0], [1], [0, 0, 1, 1], [], []>} : vector<12x12xf32>, vector<12x8xf32>, vector<12x8xf32> -> vector<12x8xf32>
    %157 = vector.extract_strided_slice %2 {offsets = [24, 0], sizes = [8, 32], strides = [1, 1]} : vector<32x32xf32> to vector<8x32xf32>
    %cst_48 = arith.constant dense<0.000000e+00> : vector<12x32xf32>
    %158 = tpu.matmul %156, %157, %cst_48 {dimension_numbers = #tpu.dot_dimension_numbers<[1], [0], [0], [1], [0, 0, 1, 1], [], []>} : vector<12x8xf32>, vector<8x32xf32>, vector<12x32xf32> -> vector<12x32xf32>
    %159 = arith.addf %141, %158 : vector<12x32xf32>
    %160 = vector.broadcast %3 : vector<1x32xf32> to vector<12x32xf32>
    %161 = arith.addf %159, %160 : vector<12x32xf32>
    %162 = vector.extract_strided_slice %161 {offsets = [4, 0], sizes = [8, 32], strides = [1, 1]} : vector<12x32xf32> to vector<8x32xf32>
    %163 = tpu.concatenate %83, %162 in 0 : vector<8x32xf32>, vector<8x32xf32> -> vector<16x32xf32>
    %c0_49 = arith.constant 0 : index
    %c0_50 = arith.constant 0 : index
    %164 = vector.load %arg4[%c0_49, %c0_50] : memref<16x32xf32, #tpu.memory_space<vmem>>, vector<16x32xf32>
    tpu.vector_store %arg4[%c0_49, %c0_50], %163 {strides = array<i32>} : memref<16x32xf32, #tpu.memory_space<vmem>>, vector<16x32xf32>,
    return
  }
}

</mosaic_0001>

<llo_original>
// kernel: forward.1
$region0: #{forward.1}
  #allocation0 [shape = 'u32[]', space=smem, size = 0x4, offset = 0x4, fixed_abs, tag = 'smem constant byte address 0x4 - core index']
  #allocation1 [shape = 'u32[144,128]{1,0:T(1,128)}', space=vmem, size = 0x12000, scoped, tag = 'internal scratch']
  %s0 = inlined_call_operand.vmem [shape: f32[24,32], index: 0, kind: input, shape index: {}]
  %s1 = inlined_call_operand.vmem [shape: f32[32,96], index: 1, kind: input, shape index: {}]
  %s2 = inlined_call_operand.vmem [shape: f32[32,32], index: 2, kind: input, shape index: {}]
  %s3 = inlined_call_operand.vmem [shape: f32[1,32], index: 3, kind: input, shape index: {}]
  %s4 = inlined_call_operand.hbm [shape: f32[16,32], index: 4, kind: output, shape index: {}]
  %s5 = sld [smem:[#allocation0]]
  $region26: #{forward.1} parent=0
    _
  %s7 = ssub.s32 1, %s5
  %s8 = scalar_select 0, %s7, %s5
  $region1: #{forward.1} parent=0
    #allocation2 [shape = 'u8[8192]{0}', space=vmem, size = 0x2000, scoped, tag = 'output window, operand 0, single buffered']
    #allocation3 [shape = 's32[1]{0}', space=sflag, size = 0x4, scoped, tag = 'scoped memory for forward.1']
    %9 = vsyncpa [#allocation3], 0
    // Predicated region
    $region2: #{forward.1} parent=1 // pred_check
      _
    $region3: #{forward.1} parent=1 // pred_check_branch
      %11 = sbr.rel (0) target = $region5
    $region4: #{forward.1} parent=1 // pred_region
      _
    $region5: #{forward.1} parent=1 // pred_fallthru
      _
    // Predicated region
    $region6: #{forward.1} parent=1 // pred_check
      _
    $region7: #{forward.1} parent=1 // pred_check_branch
      %13 = sbr.rel (0) target = $region9
    $region8: #{forward.1} parent=1 // pred_region
      _
    $region9: #{forward.1} parent=1 // pred_fallthru
      _
    // Predicated region
    $region10: #{forward.1} parent=1 // pred_check
      _
    $region11: #{forward.1} parent=1 // pred_check_branch
      %15 = sbr.rel (0) target = $region13
    $region12: #{forward.1} parent=1 // pred_region
      _
    $region13: #{forward.1} parent=1 // pred_fallthru
      _
    // Predicated region
    $region14: #{forward.1} parent=1 // pred_check
      _
    $region15: #{forward.1} parent=1 // pred_check_branch
      %17 = sbr.rel (0) target = $region17
    $region16: #{forward.1} parent=1 // pred_region
      _
    $region17: #{forward.1} parent=1 // pred_fallthru
      _
    %v18 = vld [vmem:[%s0] sm:$0xff]
    %v19 = vld [vmem:[%s0 + $0x8] sm:$0xff]
    %v20 = vld [vmem:[%s0 + $0x10] sm:$0xff]
    %v21 = vld [vmem:[%s1] sm:$0xff]
    %v22 = vld [vmem:[%s1 + $0x8] sm:$0xff]
    %v23 = vld [vmem:[%s1 + $0x10] sm:$0xff]
    %v24 = vld [vmem:[%s1 + $0x18] sm:$0xff]
    %v25 = vld [vmem:[%s2] sm:$0xff]
    %v26 = vld [vmem:[%s2 + $0x8] sm:$0xff]
    %v27 = vld [vmem:[%s2 + $0x10] sm:$0xff]
    %v28 = vld [vmem:[%s2 + $0x18] sm:$0xff]
    %v29 = vld [vmem:[%s3] sm:$0x1]
    %vm30 = vcmask 261120
    %v32 = vsel %vm30, %v18, 0
    %v35 = vsel %vm30, %v19, 0
    %v38 = vsel %vm30, %v20, 0
    %40 = vmatprep.subr.mxu0 0.0
    %41 = vmatpush1.msra.mxu0 %v21
    %42 = vmatprep.subr.mxu0 0.0
    %43 = vmatpush1.msra.mxu0 %v22
    %44 = vmatprep.subr.mxu0 0.0
    %45 = vmatpush1.msra.mxu0 %v23
    %46 = vmatprep.subr.mxu0 0.0
    %47 = vmatpush1.msra.mxu0 %v24
    %48 = vmatprep.subr.mxu0 0.0
    %49 = vmatpush1.msra.mxu0 0.0
    %50 = vmatprep.subr.mxu0 0.0
    %51 = vmatpush1.msra.mxu0 0.0
    %52 = vmatprep.subr.mxu0 0.0
    %53 = vmatpush1.msra.mxu0 0.0
    %54 = vmatprep.subr.mxu0 0.0
    %55 = vmatpush1.msra.mxu0 0.0
    %56 = vmatprep.subr.mxu0 0.0
    %57 = vmatpush1.msra.mxu0 0.0
    %58 = vmatprep.subr.mxu0 0.0
    %59 = vmatpush1.msra.mxu0 0.0
    %60 = vmatprep.subr.mxu0 0.0
    %61 = vmatpush1.msra.mxu0 0.0
    %62 = vmatprep.subr.mxu0 0.0
    %63 = vmatpush1.msra.mxu0 0.0
    %64 = vmatprep.subr.mxu0 0.0
    %65 = vmatpush1.msra.mxu0 0.0
    %66 = vmatprep.subr.mxu0 0.0
    %67 = vmatpush1.msra.mxu0 0.0
    %68 = vmatprep.subr.mxu0 0.0
    %69 = vmatpush1.msra.mxu0 0.0
    %70 = vmatprep.subr.mxu0 0.0
    %71 = vmatpush1.msra.mxu0 0.0
    %72 = vmatprep.subr.mxu0 0.0
    %73 = vmatpush1.msra.mxu0 0.0
    %74 = vmatprep.subr.mxu0 0.0
    %75 = vmatpush1.msra.mxu0 0.0
    %76 = vmatprep.subr.mxu0 0.0
    %77 = vmatpush1.msra.mxu0 0.0
    %78 = vmatprep.subr.mxu0 0.0
    %79 = vmatpush1.msra.mxu0 0.0
    %80 = vmatprep.subr.mxu0 0.0
    %81 = vmatpush1.msra.mxu0 0.0
    %82 = vmatprep.subr.mxu0 0.0
    %83 = vmatpush1.msra.mxu0 0.0
    %84 = vmatprep.subr.mxu0 0.0
    %85 = vmatpush1.msra.mxu0 0.0
    %86 = vmatprep.subr.mxu0 0.0
    %87 = vmatpush1.msra.mxu0 0.0
    %88 = vmatprep.subr.mxu0 0.0
    %89 = vmatpush1.msra.mxu0 0.0
    %90 = vmatprep.subr.mxu0 0.0
    %91 = vmatpush1.msra.mxu0 0.0
    %92 = vmatprep.subr.mxu0 0.0
    %93 = vmatpush1.msra.mxu0 0.0
    %94 = vmatprep.subr.mxu0 0.0
    %95 = vmatpush1.msra.mxu0 0.0
    %96 = vmatprep.subr.mxu0 0.0
    %97 = vmatpush1.msra.mxu0 0.0
    %98 = vmatprep.subr.mxu0 0.0
    %99 = vmatpush1.msra.mxu0 0.0
    %100 = vmatprep.subr.mxu0 0.0
    %101 = vmatpush1.msra.mxu0 0.0
    %102 = vmatprep.subr.mxu0 0.0
    %103 = vmatpush1.msra.mxu0 0.0
    %104 = vmatprep.mubr.f32.mxu0 0.0
    %105 = vmatmul.mubr.f32.gmra.mrb[0].mxu0 %v32
    %v106 = vpop.f32.mrb[0].mxu0
    %v107 = vadd.f32 0.0, %v106
    %v108 = vpop.f32.mrb[0].mxu0
    %109 = vmatprep.mubr.f32.mxu0 0.0
    %110 = vmatmul.mubr.f32.gmra.mrb[0].mxu0 %v35
    %v111 = vpop.f32.mrb[0].mxu0
    %v112 = vadd.f32 0.0, %v111
    %v113 = vpop.f32.mrb[0].mxu0
    %114 = vmatprep.mubr.f32.mxu0 0.0
    %115 = vmatmul.mubr.f32.gmra.mrb[0].mxu0 %v38
    %v116 = vpop.f32.mrb[0].mxu0
    %v117 = vadd.f32 0.0, %v116
    %v118 = vpop.f32.mrb[0].mxu0
    %119 = vdwg.mxu0
    %122 = vrot.lane.b32.xlu0 %v107, 96
    %v123 = vpop.permute.xlu0 %122
    %124 = vrot.lane.b32.xlu0 %v112, 96
    %v125 = vpop.permute.xlu0 %124
    %vm126 = vcmask 64512
    %v127 = vsel %vm126, %v107, 0
    %v129 = vsel %vm126, %v112, 0
    %v131 = vsel %vm126, %v123, 0
    %v133 = vsel %vm126, %v125, 0
    %135 = vmatprep.subr.mxu0 0.0
    %136 = vmatpush1.xpose.msra.mxu0 %v131
    %137 = vmatprep.subr.mxu0 0.0
    %138 = vmatpush1.xpose.msra.mxu0 %v133
    %139 = vmatprep.subr.mxu0 0.0
    %140 = vmatpush1.xpose.msra.mxu0 0.0
    %141 = vmatprep.subr.mxu0 0.0
    %142 = vmatpush1.xpose.msra.mxu0 0.0
    %143 = vmatprep.subr.mxu0 0.0
    %144 = vmatpush1.xpose.msra.mxu0 0.0
    %145 = vmatprep.subr.mxu0 0.0
    %146 = vmatpush1.xpose.msra.mxu0 0.0
    %147 = vmatprep.subr.mxu0 0.0
    %148 = vmatpush1.xpose.msra.mxu0 0.0
    %149 = vmatprep.subr.mxu0 0.0
    %150 = vmatpush1.xpose.msra.mxu0 0.0
    %151 = vmatprep.subr.mxu0 0.0
    %152 = vmatpush1.xpose.msra.mxu0 0.0
    %153 = vmatprep.subr.mxu0 0.0
    %154 = vmatpush1.xpose.msra.mxu0 0.0
    %155 = vmatprep.subr.mxu0 0.0
    %156 = vmatpush1.xpose.msra.mxu0 0.0
    %157 = vmatprep.subr.mxu0 0.0
    %158 = vmatpush1.xpose.msra.mxu0 0.0
    %159 = vmatprep.subr.mxu0 0.0
    %160 = vmatpush1.xpose.msra.mxu0 0.0
    %161 = vmatprep.subr.mxu0 0.0
    %162 = vmatpush1.xpose.msra.mxu0 0.0
    %163 = vmatprep.subr.mxu0 0.0
    %164 = vmatpush1.xpose.msra.mxu0 0.0
    %165 = vmatprep.subr.mxu0 0.0
    %166 = vmatpush1.xpose.msra.mxu0 0.0
    %167 = vmatprep.subr.mxu0 0.0
    %168 = vmatpush1.xpose.msra.mxu0 0.0
    %169 = vmatprep.subr.mxu0 0.0
    %170 = vmatpush1.xpose.msra.mxu0 0.0
    %171 = vmatprep.subr.mxu0 0.0
    %172 = vmatpush1.xpose.msra.mxu0 0.0
    %173 = vmatprep.subr.mxu0 0.0
    %174 = vmatpush1.xpose.msra.mxu0 0.0
    %175 = vmatprep.subr.mxu0 0.0
    %176 = vmatpush1.xpose.msra.mxu0 0.0
    %177 = vmatprep.subr.mxu0 0.0
    %178 = vmatpush1.xpose.msra.mxu0 0.0
    %179 = vmatprep.subr.mxu0 0.0
    %180 = vmatpush1.xpose.msra.mxu0 0.0
    %181 = vmatprep.subr.mxu0 0.0
    %182 = vmatpush1.xpose.msra.mxu0 0.0
    %183 = vmatprep.subr.mxu0 0.0
    %184 = vmatpush1.xpose.msra.mxu0 0.0
    %185 = vmatprep.subr.mxu0 0.0
    %186 = vmatpush1.xpose.msra.mxu0 0.0
    %187 = vmatprep.subr.mxu0 0.0
    %188 = vmatpush1.xpose.msra.mxu0 0.0
    %189 = vmatprep.subr.mxu0 0.0
    %190 = vmatpush1.xpose.msra.mxu0 0.0
    %191 = vmatprep.subr.mxu0 0.0
    %192 = vmatpush1.xpose.msra.mxu0 0.0
    %193 = vmatprep.subr.mxu0 0.0
    %194 = vmatpush1.xpose.msra.mxu0 0.0
    %195 = vmatprep.subr.mxu0 0.0
    %196 = vmatpush1.xpose.msra.mxu0 0.0
    %197 = vmatprep.subr.mxu0 0.0
    %198 = vmatpush1.xpose.msra.mxu0 0.0
    %199 = vmatprep.mubr.f32.mxu0 0.0
    %200 = vmatmul.mubr.f32.gmra.mrb[0].mxu0 %v127
    %v201 = vpop.f32.mrb[0].mxu0
    %v202 = vadd.f32 0.0, %v201
    %v203 = vpop.f32.mrb[0].mxu0
    %204 = vmatprep.mubr.f32.mxu0 0.0
    %205 = vmatmul.mubr.f32.gmra.mrb[0].mxu0 %v129
    %v206 = vpop.f32.mrb[0].mxu0
    %v207 = vadd.f32 0.0, %v206
    %v208 = vpop.f32.mrb[0].mxu0
    %209 = vdwg.mxu0
    %vm210 = vcmask 97280
    %v211 = vsel %vm210, %v202, -inf
    %212 = vmax.xlane.f32.xlu0 %v211
    %v213 = vpop.xlane.xlu0 %212
    %vm214 = vcmask 93184
    %v215 = vsel %vm214, %v207, -inf
    %216 = vmax.xlane.f32.xlu0 %v215
    %v217 = vpop.xlane.xlu0 %216
    %v218 = vsub.f32 %v202, %v213
    %v219 = vsub.f32 %v207, %v217
    %v220 = vmul.f32 %v218, 1.442695
    %v221 = vpow.pop %v220
    %v222 = vmul.f32 %v219, 1.442695
    %v223 = vpow.pop %v222
    %v224 = vsel %vm210, %v221, 0.0
    %225 = vadd.xlane.f32.xlu0 %v224
    %v226 = vpop.xlane.xlu0 %225
    %v227 = vsel %vm214, %v223, 0.0
    %228 = vadd.xlane.f32.xlu0 %v227
    %v229 = vpop.xlane.xlu0 %228
    %v230 = vrcp.pop %v226
    %v231 = vrcp.pop %v229
    %v232 = vmul.f32 %v221, %v230
    %v233 = vmul.f32 %v223, %v231
    %234 = vrot.lane.b32.xlu0 %v107, 64
    %v235 = vpop.permute.xlu0 %234
    %236 = vrot.lane.b32.xlu0 %v112, 64
    %v237 = vpop.permute.xlu0 %236
    %v240 = vsel %vm210, %v232, 0
    %v243 = vsel %vm210, %v233, 0
    %vm245 = vcmask 1043456
    %v246 = vsel %vm245, %v237, 0
    %248 = vmatprep.subr.mxu0 0.0
    %249 = vmatpush1.msra.mxu0 %v235
    %250 = vmatprep.subr.mxu0 0.0
    %251 = vmatpush1.msra.mxu0 %v246
    %252 = vmatprep.subr.mxu0 0.0
    %253 = vmatpush1.msra.mxu0 0.0
    %254 = vmatprep.subr.mxu0 0.0
    %255 = vmatpush1.msra.mxu0 0.0
    %256 = vmatprep.subr.mxu0 0.0
    %257 = vmatpush1.msra.mxu0 0.0
    %258 = vmatprep.subr.mxu0 0.0
    %259 = vmatpush1.msra.mxu0 0.0
    %260 = vmatprep.subr.mxu0 0.0
    %261 = vmatpush1.msra.mxu0 0.0
    %262 = vmatprep.subr.mxu0 0.0
    %263 = vmatpush1.msra.mxu0 0.0
    %264 = vmatprep.subr.mxu0 0.0
    %265 = vmatpush1.msra.mxu0 0.0
    %266 = vmatprep.subr.mxu0 0.0
    %267 = vmatpush1.msra.mxu0 0.0
    %268 = vmatprep.subr.mxu0 0.0
    %269 = vmatpush1.msra.mxu0 0.0
    %270 = vmatprep.subr.mxu0 0.0
    %271 = vmatpush1.msra.mxu0 0.0
    %272 = vmatprep.subr.mxu0 0.0
    %273 = vmatpush1.msra.mxu0 0.0
    %274 = vmatprep.subr.mxu0 0.0
    %275 = vmatpush1.msra.mxu0 0.0
    %276 = vmatprep.subr.mxu0 0.0
    %277 = vmatpush1.msra.mxu0 0.0
    %278 = vmatprep.subr.mxu0 0.0
    %279 = vmatpush1.msra.mxu0 0.0
    %280 = vmatprep.subr.mxu0 0.0
    %281 = vmatpush1.msra.mxu0 0.0
    %282 = vmatprep.subr.mxu0 0.0
    %283 = vmatpush1.msra.mxu0 0.0
    %284 = vmatprep.subr.mxu0 0.0
    %285 = vmatpush1.msra.mxu0 0.0
    %286 = vmatprep.subr.mxu0 0.0
    %287 = vmatpush1.msra.mxu0 0.0
    %288 = vmatprep.subr.mxu0 0.0
    %289 = vmatpush1.msra.mxu0 0.0
    %290 = vmatprep.subr.mxu0 0.0
    %291 = vmatpush1.msra.mxu0 0.0
    %292 = vmatprep.subr.mxu0 0.0
    %293 = vmatpush1.msra.mxu0 0.0
    %294 = vmatprep.subr.mxu0 0.0
    %295 = vmatpush1.msra.mxu0 0.0
    %296 = vmatprep.subr.mxu0 0.0
    %297 = vmatpush1.msra.mxu0 0.0
    %298 = vmatprep.subr.mxu0 0.0
    %299 = vmatpush1.msra.mxu0 0.0
    %300 = vmatprep.subr.mxu0 0.0
    %301 = vmatpush1.msra.mxu0 0.0
    %302 = vmatprep.subr.mxu0 0.0
    %303 = vmatpush1.msra.mxu0 0.0
    %304 = vmatprep.subr.mxu0 0.0
    %305 = vmatpush1.msra.mxu0 0.0
    %306 = vmatprep.subr.mxu0 0.0
    %307 = vmatpush1.msra.mxu0 0.0
    %308 = vmatprep.subr.mxu0 0.0
    %309 = vmatpush1.msra.mxu0 0.0
    %310 = vmatprep.subr.mxu0 0.0
    %311 = vmatpush1.msra.mxu0 0.0
    %312 = vmatprep.mubr.f32.mxu0 0.0
    %313 = vmatmul.mubr.f32.gmra.mrb[0].mxu0 %v240
    %v314 = vpop.f32.mrb[0].mxu0
    %v315 = vadd.f32 0.0, %v314
    %v316 = vpop.f32.mrb[0].mxu0
    %317 = vmatprep.mubr.f32.mxu0 0.0
    %318 = vmatmul.mubr.f32.gmra.mrb[0].mxu0 %v243
    %v319 = vpop.f32.mrb[0].mxu0
    %v320 = vadd.f32 0.0, %v319
    %v321 = vpop.f32.mrb[0].mxu0
    %322 = vdwg.mxu0
    %323 = vrot.lane.b32.xlu0 %v107, 120
    %v324 = vpop.permute.xlu0 %323
    %325 = vrot.lane.b32.xlu0 %v112, 120
    %v326 = vpop.permute.xlu0 %325
    %327 = vrot.lane.b32.xlu0 %v107, 88
    %v328 = vpop.permute.xlu0 %327
    %329 = vrot.lane.b32.xlu0 %v112, 88
    %v330 = vpop.permute.xlu0 %329
    %v331 = vsel %vm126, %v324, 0
    %v333 = vsel %vm126, %v326, 0
    %v335 = vsel %vm126, %v328, 0
    %v337 = vsel %vm126, %v330, 0
    %339 = vmatprep.subr.mxu0 0.0
    %340 = vmatpush1.xpose.msra.mxu0 %v335
    %341 = vmatprep.subr.mxu0 0.0
    %342 = vmatpush1.xpose.msra.mxu0 %v337
    %343 = vmatprep.subr.mxu0 0.0
    %344 = vmatpush1.xpose.msra.mxu0 0.0
    %345 = vmatprep.subr.mxu0 0.0
    %346 = vmatpush1.xpose.msra.mxu0 0.0
    %347 = vmatprep.subr.mxu0 0.0
    %348 = vmatpush1.xpose.msra.mxu0 0.0
    %349 = vmatprep.subr.mxu0 0.0
    %350 = vmatpush1.xpose.msra.mxu0 0.0
    %351 = vmatprep.subr.mxu0 0.0
    %352 = vmatpush1.xpose.msra.mxu0 0.0
    %353 = vmatprep.subr.mxu0 0.0
    %354 = vmatpush1.xpose.msra.mxu0 0.0
    %355 = vmatprep.subr.mxu0 0.0
    %356 = vmatpush1.xpose.msra.mxu0 0.0
    %357 = vmatprep.subr.mxu0 0.0
    %358 = vmatpush1.xpose.msra.mxu0 0.0
    %359 = vmatprep.subr.mxu0 0.0
    %360 = vmatpush1.xpose.msra.mxu0 0.0
    %361 = vmatprep.subr.mxu0 0.0
    %362 = vmatpush1.xpose.msra.mxu0 0.0
    %363 = vmatprep.subr.mxu0 0.0
    %364 = vmatpush1.xpose.msra.mxu0 0.0
    %365 = vmatprep.subr.mxu0 0.0
    %366 = vmatpush1.xpose.msra.mxu0 0.0
    %367 = vmatprep.subr.mxu0 0.0
    %368 = vmatpush1.xpose.msra.mxu0 0.0
    %369 = vmatprep.subr.mxu0 0.0
    %370 = vmatpush1.xpose.msra.mxu0 0.0
    %371 = vmatprep.subr.mxu0 0.0
    %372 = vmatpush1.xpose.msra.mxu0 0.0
    %373 = vmatprep.subr.mxu0 0.0
    %374 = vmatpush1.xpose.msra.mxu0 0.0
    %375 = vmatprep.subr.mxu0 0.0
    %376 = vmatpush1.xpose.msra.mxu0 0.0
    %377 = vmatprep.subr.mxu0 0.0
    %378 = vmatpush1.xpose.msra.mxu0 0.0
    %379 = vmatprep.subr.mxu0 0.0
    %380 = vmatpush1.xpose.msra.mxu0 0.0
    %381 = vmatprep.subr.mxu0 0.0
    %382 = vmatpush1.xpose.msra.mxu0 0.0
    %383 = vmatprep.subr.mxu0 0.0
    %384 = vmatpush1.xpose.msra.mxu0 0.0
    %385 = vmatprep.subr.mxu0 0.0
    %386 = vmatpush1.xpose.msra.mxu0 0.0
    %387 = vmatprep.subr.mxu0 0.0
    %388 = vmatpush1.xpose.msra.mxu0 0.0
    %389 = vmatprep.subr.mxu0 0.0
    %390 = vmatpush1.xpose.msra.mxu0 0.0
    %391 = vmatprep.subr.mxu0 0.0
    %392 = vmatpush1.xpose.msra.mxu0 0.0
    %393 = vmatprep.subr.mxu0 0.0
    %394 = vmatpush1.xpose.msra.mxu0 0.0
    %395 = vmatprep.subr.mxu0 0.0
    %396 = vmatpush1.xpose.msra.mxu0 0.0
    %397 = vmatprep.subr.mxu0 0.0
    %398 = vmatpush1.xpose.msra.mxu0 0.0
    %399 = vmatprep.subr.mxu0 0.0
    %400 = vmatpush1.xpose.msra.mxu0 0.0
    %401 = vmatprep.subr.mxu0 0.0
    %402 = vmatpush1.xpose.msra.mxu0 0.0
    %403 = vmatprep.mubr.f32.mxu0 0.0
    %404 = vmatmul.mubr.f32.gmra.mrb[0].mxu0 %v331
    %v405 = vpop.f32.mrb[0].mxu0
    %v406 = vadd.f32 0.0, %v405
    %v407 = vpop.f32.mrb[0].mxu0
    %408 = vmatprep.mubr.f32.mxu0 0.0
    %409 = vmatmul.mubr.f32.gmra.mrb[0].mxu0 %v333
    %v410 = vpop.f32.mrb[0].mxu0
    %v411 = vadd.f32 0.0, %v410
    %v412 = vpop.f32.mrb[0].mxu0
    %413 = vdwg.mxu0
    %v414 = vsel %vm210, %v406, -inf
    %415 = vmax.xlane.f32.xlu0 %v414
    %v416 = vpop.xlane.xlu0 %415
    %v417 = vsel %vm214, %v411, -inf
    %418 = vmax.xlane.f32.xlu0 %v417
    %v419 = vpop.xlane.xlu0 %418
    %v420 = vsub.f32 %v406, %v416
    %v421 = vsub.f32 %v411, %v419
    %v422 = vmul.f32 %v420, 1.442695
    %v423 = vpow.pop %v422
    %v424 = vmul.f32 %v421, 1.442695
    %v425 = vpow.pop %v424
    %v426 = vsel %vm210, %v423, 0.0
    %427 = vadd.xlane.f32.xlu0 %v426
    %v428 = vpop.xlane.xlu0 %427
    %v429 = vsel %vm214, %v425, 0.0
    %430 = vadd.xlane.f32.xlu0 %v429
    %v431 = vpop.xlane.xlu0 %430
    %v432 = vrcp.pop %v428
    %v433 = vrcp.pop %v431
    %v434 = vmul.f32 %v423, %v432
    %v435 = vmul.f32 %v425, %v433
    %436 = vrot.lane.b32.xlu0 %v107, 56
    %v437 = vpop.permute.xlu0 %436
    %438 = vrot.lane.b32.xlu0 %v112, 56
    %v439 = vpop.permute.xlu0 %438
    %v442 = vsel %vm210, %v434, 0
    %v445 = vsel %vm210, %v435, 0
    %v447 = vsel %vm245, %v439, 0
    %449 = vmatprep.subr.mxu0 0.0
    %450 = vmatpush1.msra.mxu0 %v437
    %451 = vmatprep.subr.mxu0 0.0
    %452 = vmatpush1.msra.mxu0 %v447
    %453 = vmatprep.subr.mxu0 0.0
    %454 = vmatpush1.msra.mxu0 0.0
    %455 = vmatprep.subr.mxu0 0.0
    %456 = vmatpush1.msra.mxu0 0.0
    %457 = vmatprep.subr.mxu0 0.0
    %458 = vmatpush1.msra.mxu0 0.0
    %459 = vmatprep.subr.mxu0 0.0
    %460 = vmatpush1.msra.mxu0 0.0
    %461 = vmatprep.subr.mxu0 0.0
    %462 = vmatpush1.msra.mxu0 0.0
    %463 = vmatprep.subr.mxu0 0.0
    %464 = vmatpush1.msra.mxu0 0.0
    %465 = vmatprep.subr.mxu0 0.0
    %466 = vmatpush1.msra.mxu0 0.0
    %467 = vmatprep.subr.mxu0 0.0
    %468 = vmatpush1.msra.mxu0 0.0
    %469 = vmatprep.subr.mxu0 0.0
    %470 = vmatpush1.msra.mxu0 0.0
    %471 = vmatprep.subr.mxu0 0.0
    %472 = vmatpush1.msra.mxu0 0.0
    %473 = vmatprep.subr.mxu0 0.0
    %474 = vmatpush1.msra.mxu0 0.0
    %475 = vmatprep.subr.mxu0 0.0
    %476 = vmatpush1.msra.mxu0 0.0
    %477 = vmatprep.subr.mxu0 0.0
    %478 = vmatpush1.msra.mxu0 0.0
    %479 = vmatprep.subr.mxu0 0.0
    %480 = vmatpush1.msra.mxu0 0.0
    %481 = vmatprep.subr.mxu0 0.0
    %482 = vmatpush1.msra.mxu0 0.0
    %483 = vmatprep.subr.mxu0 0.0
    %484 = vmatpush1.msra.mxu0 0.0
    %485 = vmatprep.subr.mxu0 0.0
    %486 = vmatpush1.msra.mxu0 0.0
    %487 = vmatprep.subr.mxu0 0.0
    %488 = vmatpush1.msra.mxu0 0.0
    %489 = vmatprep.subr.mxu0 0.0
    %490 = vmatpush1.msra.mxu0 0.0
    %491 = vmatprep.subr.mxu0 0.0
    %492 = vmatpush1.msra.mxu0 0.0
    %493 = vmatprep.subr.mxu0 0.0
    %494 = vmatpush1.msra.mxu0 0.0
    %495 = vmatprep.subr.mxu0 0.0
    %496 = vmatpush1.msra.mxu0 0.0
    %497 = vmatprep.subr.mxu0 0.0
    %498 = vmatpush1.msra.mxu0 0.0
    %499 = vmatprep.subr.mxu0 0.0
    %500 = vmatpush1.msra.mxu0 0.0
    %501 = vmatprep.subr.mxu0 0.0
    %502 = vmatpush1.msra.mxu0 0.0
    %503 = vmatprep.subr.mxu0 0.0
    %504 = vmatpush1.msra.mxu0 0.0
    %505 = vmatprep.subr.mxu0 0.0
    %506 = vmatpush1.msra.mxu0 0.0
    %507 = vmatprep.subr.mxu0 0.0
    %508 = vmatpush1.msra.mxu0 0.0
    %509 = vmatprep.subr.mxu0 0.0
    %510 = vmatpush1.msra.mxu0 0.0
    %511 = vmatprep.subr.mxu0 0.0
    %512 = vmatpush1.msra.mxu0 0.0
    %513 = vmatprep.mubr.f32.mxu0 0.0
    %514 = vmatmul.mubr.f32.gmra.mrb[0].mxu0 %v442
    %v515 = vpop.f32.mrb[0].mxu0
    %v516 = vadd.f32 0.0, %v515
    %v517 = vpop.f32.mrb[0].mxu0
    %518 = vmatprep.mubr.f32.mxu0 0.0
    %519 = vmatmul.mubr.f32.gmra.mrb[0].mxu0 %v445
    %v520 = vpop.f32.mrb[0].mxu0
    %v521 = vadd.f32 0.0, %v520
    %v522 = vpop.f32.mrb[0].mxu0
    %523 = vdwg.mxu0
    %v525 = vsel %vm126, %v516, 0
    %v528 = vsel %vm126, %v521, 0
    %530 = vmatprep.subr.mxu0 0.0
    %531 = vmatpush1.msra.mxu0 %v26
    %532 = vmatprep.subr.mxu0 0.0
    %533 = vmatpush1.msra.mxu0 0.0
    %534 = vmatprep.subr.mxu0 0.0
    %535 = vmatpush1.msra.mxu0 0.0
    %536 = vmatprep.subr.mxu0 0.0
    %537 = vmatpush1.msra.mxu0 0.0
    %538 = vmatprep.subr.mxu0 0.0
    %539 = vmatpush1.msra.mxu0 0.0
    %540 = vmatprep.subr.mxu0 0.0
    %541 = vmatpush1.msra.mxu0 0.0
    %542 = vmatprep.subr.mxu0 0.0
    %543 = vmatpush1.msra.mxu0 0.0
    %544 = vmatprep.subr.mxu0 0.0
    %545 = vmatpush1.msra.mxu0 0.0
    %546 = vmatprep.subr.mxu0 0.0
    %547 = vmatpush1.msra.mxu0 0.0
    %548 = vmatprep.subr.mxu0 0.0
    %549 = vmatpush1.msra.mxu0 0.0
    %550 = vmatprep.subr.mxu0 0.0
    %551 = vmatpush1.msra.mxu0 0.0
    %552 = vmatprep.subr.mxu0 0.0
    %553 = vmatpush1.msra.mxu0 0.0
    %554 = vmatprep.subr.mxu0 0.0
    %555 = vmatpush1.msra.mxu0 0.0
    %556 = vmatprep.subr.mxu0 0.0
    %557 = vmatpush1.msra.mxu0 0.0
    %558 = vmatprep.subr.mxu0 0.0
    %559 = vmatpush1.msra.mxu0 0.0
    %560 = vmatprep.subr.mxu0 0.0
    %561 = vmatpush1.msra.mxu0 0.0
    %562 = vmatprep.subr.mxu0 0.0
    %563 = vmatpush1.msra.mxu0 0.0
    %564 = vmatprep.subr.mxu0 0.0
    %565 = vmatpush1.msra.mxu0 0.0
    %566 = vmatprep.subr.mxu0 0.0
    %567 = vmatpush1.msra.mxu0 0.0
    %568 = vmatprep.subr.mxu0 0.0
    %569 = vmatpush1.msra.mxu0 0.0
    %570 = vmatprep.subr.mxu0 0.0
    %571 = vmatpush1.msra.mxu0 0.0
    %572 = vmatprep.subr.mxu0 0.0
    %573 = vmatpush1.msra.mxu0 0.0
    %574 = vmatprep.subr.mxu0 0.0
    %575 = vmatpush1.msra.mxu0 0.0
    %576 = vmatprep.subr.mxu0 0.0
    %577 = vmatpush1.msra.mxu0 0.0
    %578 = vmatprep.subr.mxu0 0.0
    %579 = vmatpush1.msra.mxu0 0.0
    %580 = vmatprep.subr.mxu0 0.0
    %581 = vmatpush1.msra.mxu0 0.0
    %582 = vmatprep.subr.mxu0 0.0
    %583 = vmatpush1.msra.mxu0 0.0
    %584 = vmatprep.subr.mxu0 0.0
    %585 = vmatpush1.msra.mxu0 0.0
    %586 = vmatprep.subr.mxu0 0.0
    %587 = vmatpush1.msra.mxu0 0.0
    %588 = vmatprep.subr.mxu0 0.0
    %589 = vmatpush1.msra.mxu0 0.0
    %590 = vmatprep.subr.mxu0 0.0
    %591 = vmatpush1.msra.mxu0 0.0
    %592 = vmatprep.subr.mxu0 0.0
    %593 = vmatpush1.msra.mxu0 0.0
    %594 = vmatprep.mubr.f32.mxu0 0.0
    %595 = vmatmul.mubr.f32.gmra.mrb[0].mxu0 %v525
    %v596 = vpop.f32.mrb[0].mxu0
    %v597 = vadd.f32 0.0, %v596
    %v598 = vpop.f32.mrb[0].mxu0
    %599 = vmatprep.mubr.f32.mxu0 0.0
    %600 = vmatmul.mubr.f32.gmra.mrb[0].mxu0 %v528
    %v601 = vpop.f32.mrb[0].mxu0
    %v602 = vadd.f32 0.0, %v601
    %v603 = vpop.f32.mrb[0].mxu0
    %604 = vdwg.mxu0
    %v606 = vsel %vm126, %v315, 0
    %v609 = vsel %vm126, %v320, 0
    %611 = vmatprep.subr.mxu0 0.0
    %612 = vmatpush1.msra.mxu0 %v25
    %613 = vmatprep.subr.mxu0 0.0
    %614 = vmatpush1.msra.mxu0 0.0
    %615 = vmatprep.subr.mxu0 0.0
    %616 = vmatpush1.msra.mxu0 0.0
    %617 = vmatprep.subr.mxu0 0.0
    %618 = vmatpush1.msra.mxu0 0.0
    %619 = vmatprep.subr.mxu0 0.0
    %620 = vmatpush1.msra.mxu0 0.0
    %621 = vmatprep.subr.mxu0 0.0
    %622 = vmatpush1.msra.mxu0 0.0
    %623 = vmatprep.subr.mxu0 0.0
    %624 = vmatpush1.msra.mxu0 0.0
    %625 = vmatprep.subr.mxu0 0.0
    %626 = vmatpush1.msra.mxu0 0.0
    %627 = vmatprep.subr.mxu0 0.0
    %628 = vmatpush1.msra.mxu0 0.0
    %629 = vmatprep.subr.mxu0 0.0
    %630 = vmatpush1.msra.mxu0 0.0
    %631 = vmatprep.subr.mxu0 0.0
    %632 = vmatpush1.msra.mxu0 0.0
    %633 = vmatprep.subr.mxu0 0.0
    %634 = vmatpush1.msra.mxu0 0.0
    %635 = vmatprep.subr.mxu0 0.0
    %636 = vmatpush1.msra.mxu0 0.0
    %637 = vmatprep.subr.mxu0 0.0
    %638 = vmatpush1.msra.mxu0 0.0
    %639 = vmatprep.subr.mxu0 0.0
    %640 = vmatpush1.msra.mxu0 0.0
    %641 = vmatprep.subr.mxu0 0.0
    %642 = vmatpush1.msra.mxu0 0.0
    %643 = vmatprep.subr.mxu0 0.0
    %644 = vmatpush1.msra.mxu0 0.0
    %645 = vmatprep.subr.mxu0 0.0
    %646 = vmatpush1.msra.mxu0 0.0
    %647 = vmatprep.subr.mxu0 0.0
    %648 = vmatpush1.msra.mxu0 0.0
    %649 = vmatprep.subr.mxu0 0.0
    %650 = vmatpush1.msra.mxu0 0.0
    %651 = vmatprep.subr.mxu0 0.0
    %652 = vmatpush1.msra.mxu0 0.0
    %653 = vmatprep.subr.mxu0 0.0
    %654 = vmatpush1.msra.mxu0 0.0
    %655 = vmatprep.subr.mxu0 0.0
    %656 = vmatpush1.msra.mxu0 0.0
    %657 = vmatprep.subr.mxu0 0.0
    %658 = vmatpush1.msra.mxu0 0.0
    %659 = vmatprep.subr.mxu0 0.0
    %660 = vmatpush1.msra.mxu0 0.0
    %661 = vmatprep.subr.mxu0 0.0
    %662 = vmatpush1.msra.mxu0 0.0
    %663 = vmatprep.subr.mxu0 0.0
    %664 = vmatpush1.msra.mxu0 0.0
    %665 = vmatprep.subr.mxu0 0.0
    %666 = vmatpush1.msra.mxu0 0.0
    %667 = vmatprep.subr.mxu0 0.0
    %668 = vmatpush1.msra.mxu0 0.0
    %669 = vmatprep.subr.mxu0 0.0
    %670 = vmatpush1.msra.mxu0 0.0
    %671 = vmatprep.subr.mxu0 0.0
    %672 = vmatpush1.msra.mxu0 0.0
    %673 = vmatprep.subr.mxu0 0.0
    %674 = vmatpush1.msra.mxu0 0.0
    %675 = vmatprep.mubr.f32.mxu0 0.0
    %676 = vmatmul.mubr.f32.gmra.mrb[0].mxu0 %v606
    %v677 = vpop.f32.mrb[0].mxu0
    %v678 = vadd.f32 %v597, %v677
    %v679 = vpop.f32.mrb[0].mxu0
    %680 = vmatprep.mubr.f32.mxu0 0.0
    %681 = vmatmul.mubr.f32.gmra.mrb[0].mxu0 %v609
    %v682 = vpop.f32.mrb[0].mxu0
    %v683 = vadd.f32 %v602, %v682
    %v684 = vpop.f32.mrb[0].mxu0
    %685 = vdwg.mxu0
    %686 = vrot.lane.b32.xlu0 %v107, 112
    %v687 = vpop.permute.xlu0 %686
    %688 = vrot.lane.b32.xlu0 %v112, 112
    %v689 = vpop.permute.xlu0 %688
    %690 = vrot.lane.b32.xlu0 %v107, 80
    %v691 = vpop.permute.xlu0 %690
    %692 = vrot.lane.b32.xlu0 %v112, 80
    %v693 = vpop.permute.xlu0 %692
    %v694 = vsel %vm126, %v687, 0
    %v696 = vsel %vm126, %v689, 0
    %v698 = vsel %vm126, %v691, 0
    %v700 = vsel %vm126, %v693, 0
    %702 = vmatprep.subr.mxu0 0.0
    %703 = vmatpush1.xpose.msra.mxu0 %v698
    %704 = vmatprep.subr.mxu0 0.0
    %705 = vmatpush1.xpose.msra.mxu0 %v700
    %706 = vmatprep.subr.mxu0 0.0
    %707 = vmatpush1.xpose.msra.mxu0 0.0
    %708 = vmatprep.subr.mxu0 0.0
    %709 = vmatpush1.xpose.msra.mxu0 0.0
    %710 = vmatprep.subr.mxu0 0.0
    %711 = vmatpush1.xpose.msra.mxu0 0.0
    %712 = vmatprep.subr.mxu0 0.0
    %713 = vmatpush1.xpose.msra.mxu0 0.0
    %714 = vmatprep.subr.mxu0 0.0
    %715 = vmatpush1.xpose.msra.mxu0 0.0
    %716 = vmatprep.subr.mxu0 0.0
    %717 = vmatpush1.xpose.msra.mxu0 0.0
    %718 = vmatprep.subr.mxu0 0.0
    %719 = vmatpush1.xpose.msra.mxu0 0.0
    %720 = vmatprep.subr.mxu0 0.0
    %721 = vmatpush1.xpose.msra.mxu0 0.0
    %722 = vmatprep.subr.mxu0 0.0
    %723 = vmatpush1.xpose.msra.mxu0 0.0
    %724 = vmatprep.subr.mxu0 0.0
    %725 = vmatpush1.xpose.msra.mxu0 0.0
    %726 = vmatprep.subr.mxu0 0.0
    %727 = vmatpush1.xpose.msra.mxu0 0.0
    %728 = vmatprep.subr.mxu0 0.0
    %729 = vmatpush1.xpose.msra.mxu0 0.0
    %730 = vmatprep.subr.mxu0 0.0
    %731 = vmatpush1.xpose.msra.mxu0 0.0
    %732 = vmatprep.subr.mxu0 0.0
    %733 = vmatpush1.xpose.msra.mxu0 0.0
    %734 = vmatprep.subr.mxu0 0.0
    %735 = vmatpush1.xpose.msra.mxu0 0.0
    %736 = vmatprep.subr.mxu0 0.0
    %737 = vmatpush1.xpose.msra.mxu0 0.0
    %738 = vmatprep.subr.mxu0 0.0
    %739 = vmatpush1.xpose.msra.mxu0 0.0
    %740 = vmatprep.subr.mxu0 0.0
    %741 = vmatpush1.xpose.msra.mxu0 0.0
    %742 = vmatprep.subr.mxu0 0.0
    %743 = vmatpush1.xpose.msra.mxu0 0.0
    %744 = vmatprep.subr.mxu0 0.0
    %745 = vmatpush1.xpose.msra.mxu0 0.0
    %746 = vmatprep.subr.mxu0 0.0
    %747 = vmatpush1.xpose.msra.mxu0 0.0
    %748 = vmatprep.subr.mxu0 0.0
    %749 = vmatpush1.xpose.msra.mxu0 0.0
    %750 = vmatprep.subr.mxu0 0.0
    %751 = vmatpush1.xpose.msra.mxu0 0.0
    %752 = vmatprep.subr.mxu0 0.0
    %753 = vmatpush1.xpose.msra.mxu0 0.0
    %754 = vmatprep.subr.mxu0 0.0
    %755 = vmatpush1.xpose.msra.mxu0 0.0
    %756 = vmatprep.subr.mxu0 0.0
    %757 = vmatpush1.xpose.msra.mxu0 0.0
    %758 = vmatprep.subr.mxu0 0.0
    %759 = vmatpush1.xpose.msra.mxu0 0.0
    %760 = vmatprep.subr.mxu0 0.0
    %761 = vmatpush1.xpose.msra.mxu0 0.0
    %762 = vmatprep.subr.mxu0 0.0
    %763 = vmatpush1.xpose.msra.mxu0 0.0
    %764 = vmatprep.subr.mxu0 0.0
    %765 = vmatpush1.xpose.msra.mxu0 0.0
    %766 = vmatprep.mubr.f32.mxu0 0.0
    %767 = vmatmul.mubr.f32.gmra.mrb[0].mxu0 %v694
    %v768 = vpop.f32.mrb[0].mxu0
    %v769 = vadd.f32 0.0, %v768
    %v770 = vpop.f32.mrb[0].mxu0
    %771 = vmatprep.mubr.f32.mxu0 0.0
    %772 = vmatmul.mubr.f32.gmra.mrb[0].mxu0 %v696
    %v773 = vpop.f32.mrb[0].mxu0
    %v774 = vadd.f32 0.0, %v773
    %v775 = vpop.f32.mrb[0].mxu0
    %776 = vdwg.mxu0
    %v777 = vsel %vm210, %v769, -inf
    %778 = vmax.xlane.f32.xlu0 %v777
    %v779 = vpop.xlane.xlu0 %778
    %v780 = vsel %vm214, %v774, -inf
    %781 = vmax.xlane.f32.xlu0 %v780
    %v782 = vpop.xlane.xlu0 %781
    %v783 = vsub.f32 %v769, %v779
    %v784 = vsub.f32 %v774, %v782
    %v785 = vmul.f32 %v783, 1.442695
    %v786 = vpow.pop %v785
    %v787 = vmul.f32 %v784, 1.442695
    %v788 = vpow.pop %v787
    %v789 = vsel %vm210, %v786, 0.0
    %790 = vadd.xlane.f32.xlu0 %v789
    %v791 = vpop.xlane.xlu0 %790
    %v792 = vsel %vm214, %v788, 0.0
    %793 = vadd.xlane.f32.xlu0 %v792
    %v794 = vpop.xlane.xlu0 %793
    %v795 = vrcp.pop %v791
    %v796 = vrcp.pop %v794
    %v797 = vmul.f32 %v786, %v795
    %v798 = vmul.f32 %v788, %v796
    %799 = vrot.lane.b32.xlu0 %v107, 48
    %v800 = vpop.permute.xlu0 %799
    %801 = vrot.lane.b32.xlu0 %v112, 48
    %v802 = vpop.permute.xlu0 %801
    %v805 = vsel %vm210, %v797, 0
    %v808 = vsel %vm210, %v798, 0
    %v810 = vsel %vm245, %v802, 0
    %812 = vmatprep.subr.mxu0 0.0
    %813 = vmatpush1.msra.mxu0 %v800
    %814 = vmatprep.subr.mxu0 0.0
    %815 = vmatpush1.msra.mxu0 %v810
    %816 = vmatprep.subr.mxu0 0.0
    %817 = vmatpush1.msra.mxu0 0.0
    %818 = vmatprep.subr.mxu0 0.0
    %819 = vmatpush1.msra.mxu0 0.0
    %820 = vmatprep.subr.mxu0 0.0
    %821 = vmatpush1.msra.mxu0 0.0
    %822 = vmatprep.subr.mxu0 0.0
    %823 = vmatpush1.msra.mxu0 0.0
    %824 = vmatprep.subr.mxu0 0.0
    %825 = vmatpush1.msra.mxu0 0.0
    %826 = vmatprep.subr.mxu0 0.0
    %827 = vmatpush1.msra.mxu0 0.0
    %828 = vmatprep.subr.mxu0 0.0
    %829 = vmatpush1.msra.mxu0 0.0
    %830 = vmatprep.subr.mxu0 0.0
    %831 = vmatpush1.msra.mxu0 0.0
    %832 = vmatprep.subr.mxu0 0.0
    %833 = vmatpush1.msra.mxu0 0.0
    %834 = vmatprep.subr.mxu0 0.0
    %835 = vmatpush1.msra.mxu0 0.0
    %836 = vmatprep.subr.mxu0 0.0
    %837 = vmatpush1.msra.mxu0 0.0
    %838 = vmatprep.subr.mxu0 0.0
    %839 = vmatpush1.msra.mxu0 0.0
    %840 = vmatprep.subr.mxu0 0.0
    %841 = vmatpush1.msra.mxu0 0.0
    %842 = vmatprep.subr.mxu0 0.0
    %843 = vmatpush1.msra.mxu0 0.0
    %844 = vmatprep.subr.mxu0 0.0
    %845 = vmatpush1.msra.mxu0 0.0
    %846 = vmatprep.subr.mxu0 0.0
    %847 = vmatpush1.msra.mxu0 0.0
    %848 = vmatprep.subr.mxu0 0.0
    %849 = vmatpush1.msra.mxu0 0.0
    %850 = vmatprep.subr.mxu0 0.0
    %851 = vmatpush1.msra.mxu0 0.0
    %852 = vmatprep.subr.mxu0 0.0
    %853 = vmatpush1.msra.mxu0 0.0
    %854 = vmatprep.subr.mxu0 0.0
    %855 = vmatpush1.msra.mxu0 0.0
    %856 = vmatprep.subr.mxu0 0.0
    %857 = vmatpush1.msra.mxu0 0.0
    %858 = vmatprep.subr.mxu0 0.0
    %859 = vmatpush1.msra.mxu0 0.0
    %860 = vmatprep.subr.mxu0 0.0
    %861 = vmatpush1.msra.mxu0 0.0
    %862 = vmatprep.subr.mxu0 0.0
    %863 = vmatpush1.msra.mxu0 0.0
    %864 = vmatprep.subr.mxu0 0.0
    %865 = vmatpush1.msra.mxu0 0.0
    %866 = vmatprep.subr.mxu0 0.0
    %867 = vmatpush1.msra.mxu0 0.0
    %868 = vmatprep.subr.mxu0 0.0
    %869 = vmatpush1.msra.mxu0 0.0
    %870 = vmatprep.subr.mxu0 0.0
    %871 = vmatpush1.msra.mxu0 0.0
    %872 = vmatprep.subr.mxu0 0.0
    %873 = vmatpush1.msra.mxu0 0.0
    %874 = vmatprep.subr.mxu0 0.0
    %875 = vmatpush1.msra.mxu0 0.0
    %876 = vmatprep.mubr.f32.mxu0 0.0
    %877 = vmatmul.mubr.f32.gmra.mrb[0].mxu0 %v805
    %v878 = vpop.f32.mrb[0].mxu0
    %v879 = vadd.f32 0.0, %v878
    %v880 = vpop.f32.mrb[0].mxu0
    %881 = vmatprep.mubr.f32.mxu0 0.0
    %882 = vmatmul.mubr.f32.gmra.mrb[0].mxu0 %v808
    %v883 = vpop.f32.mrb[0].mxu0
    %v884 = vadd.f32 0.0, %v883
    %v885 = vpop.f32.mrb[0].mxu0
    %886 = vdwg.mxu0
    %v888 = vsel %vm126, %v879, 0
    %v891 = vsel %vm126, %v884, 0
    %893 = vmatprep.subr.mxu0 0.0
    %894 = vmatpush1.msra.mxu0 %v27
    %895 = vmatprep.subr.mxu0 0.0
    %896 = vmatpush1.msra.mxu0 0.0
    %897 = vmatprep.subr.mxu0 0.0
    %898 = vmatpush1.msra.mxu0 0.0
    %899 = vmatprep.subr.mxu0 0.0
    %900 = vmatpush1.msra.mxu0 0.0
    %901 = vmatprep.subr.mxu0 0.0
    %902 = vmatpush1.msra.mxu0 0.0
    %903 = vmatprep.subr.mxu0 0.0
    %904 = vmatpush1.msra.mxu0 0.0
    %905 = vmatprep.subr.mxu0 0.0
    %906 = vmatpush1.msra.mxu0 0.0
    %907 = vmatprep.subr.mxu0 0.0
    %908 = vmatpush1.msra.mxu0 0.0
    %909 = vmatprep.subr.mxu0 0.0
    %910 = vmatpush1.msra.mxu0 0.0
    %911 = vmatprep.subr.mxu0 0.0
    %912 = vmatpush1.msra.mxu0 0.0
    %913 = vmatprep.subr.mxu0 0.0
    %914 = vmatpush1.msra.mxu0 0.0
    %915 = vmatprep.subr.mxu0 0.0
    %916 = vmatpush1.msra.mxu0 0.0
    %917 = vmatprep.subr.mxu0 0.0
    %918 = vmatpush1.msra.mxu0 0.0
    %919 = vmatprep.subr.mxu0 0.0
    %920 = vmatpush1.msra.mxu0 0.0
    %921 = vmatprep.subr.mxu0 0.0
    %922 = vmatpush1.msra.mxu0 0.0
    %923 = vmatprep.subr.mxu0 0.0
    %924 = vmatpush1.msra.mxu0 0.0
    %925 = vmatprep.subr.mxu0 0.0
    %926 = vmatpush1.msra.mxu0 0.0
    %927 = vmatprep.subr.mxu0 0.0
    %928 = vmatpush1.msra.mxu0 0.0
    %929 = vmatprep.subr.mxu0 0.0
    %930 = vmatpush1.msra.mxu0 0.0
    %931 = vmatprep.subr.mxu0 0.0
    %932 = vmatpush1.msra.mxu0 0.0
    %933 = vmatprep.subr.mxu0 0.0
    %934 = vmatpush1.msra.mxu0 0.0
    %935 = vmatprep.subr.mxu0 0.0
    %936 = vmatpush1.msra.mxu0 0.0
    %937 = vmatprep.subr.mxu0 0.0
    %938 = vmatpush1.msra.mxu0 0.0
    %939 = vmatprep.subr.mxu0 0.0
    %940 = vmatpush1.msra.mxu0 0.0
    %941 = vmatprep.subr.mxu0 0.0
    %942 = vmatpush1.msra.mxu0 0.0
    %943 = vmatprep.subr.mxu0 0.0
    %944 = vmatpush1.msra.mxu0 0.0
    %945 = vmatprep.subr.mxu0 0.0
    %946 = vmatpush1.msra.mxu0 0.0
    %947 = vmatprep.subr.mxu0 0.0
    %948 = vmatpush1.msra.mxu0 0.0
    %949 = vmatprep.subr.mxu0 0.0
    %950 = vmatpush1.msra.mxu0 0.0
    %951 = vmatprep.subr.mxu0 0.0
    %952 = vmatpush1.msra.mxu0 0.0
    %953 = vmatprep.subr.mxu0 0.0
    %954 = vmatpush1.msra.mxu0 0.0
    %955 = vmatprep.subr.mxu0 0.0
    %956 = vmatpush1.msra.mxu0 0.0
    %957 = vmatprep.mubr.f32.mxu0 0.0
    %958 = vmatmul.mubr.f32.gmra.mrb[0].mxu0 %v888
    %v959 = vpop.f32.mrb[0].mxu0
    %v960 = vadd.f32 0.0, %v959
    %v961 = vpop.f32.mrb[0].mxu0
    %962 = vmatprep.mubr.f32.mxu0 0.0
    %963 = vmatmul.mubr.f32.gmra.mrb[0].mxu0 %v891
    %v964 = vpop.f32.mrb[0].mxu0
    %v965 = vadd.f32 0.0, %v964
    %v966 = vpop.f32.mrb[0].mxu0
    %967 = vdwg.mxu0
    %v968 = vadd.f32 %v678, %v960
    %v969 = vadd.f32 %v683, %v965
    %970 = vrot.lane.b32.xlu0 %v107, 104
    %v971 = vpop.permute.xlu0 %970
    %972 = vrot.lane.b32.xlu0 %v112, 104
    %v973 = vpop.permute.xlu0 %972
    %974 = vrot.lane.b32.xlu0 %v107, 72
    %v975 = vpop.permute.xlu0 %974
    %976 = vrot.lane.b32.xlu0 %v112, 72
    %v977 = vpop.permute.xlu0 %976
    %v978 = vsel %vm126, %v971, 0
    %v980 = vsel %vm126, %v973, 0
    %v982 = vsel %vm126, %v975, 0
    %v984 = vsel %vm126, %v977, 0
    %986 = vmatprep.subr.mxu0 0.0
    %987 = vmatpush1.xpose.msra.mxu0 %v982
    %988 = vmatprep.subr.mxu0 0.0
    %989 = vmatpush1.xpose.msra.mxu0 %v984
    %990 = vmatprep.subr.mxu0 0.0
    %991 = vmatpush1.xpose.msra.mxu0 0.0
    %992 = vmatprep.subr.mxu0 0.0
    %993 = vmatpush1.xpose.msra.mxu0 0.0
    %994 = vmatprep.subr.mxu0 0.0
    %995 = vmatpush1.xpose.msra.mxu0 0.0
    %996 = vmatprep.subr.mxu0 0.0
    %997 = vmatpush1.xpose.msra.mxu0 0.0
    %998 = vmatprep.subr.mxu0 0.0
    %999 = vmatpush1.xpose.msra.mxu0 0.0
    %1000 = vmatprep.subr.mxu0 0.0
    %1001 = vmatpush1.xpose.msra.mxu0 0.0
    %1002 = vmatprep.subr.mxu0 0.0
    %1003 = vmatpush1.xpose.msra.mxu0 0.0
    %1004 = vmatprep.subr.mxu0 0.0
    %1005 = vmatpush1.xpose.msra.mxu0 0.0
    %1006 = vmatprep.subr.mxu0 0.0
    %1007 = vmatpush1.xpose.msra.mxu0 0.0
    %1008 = vmatprep.subr.mxu0 0.0
    %1009 = vmatpush1.xpose.msra.mxu0 0.0
    %1010 = vmatprep.subr.mxu0 0.0
    %1011 = vmatpush1.xpose.msra.mxu0 0.0
    %1012 = vmatprep.subr.mxu0 0.0
    %1013 = vmatpush1.xpose.msra.mxu0 0.0
    %1014 = vmatprep.subr.mxu0 0.0
    %1015 = vmatpush1.xpose.msra.mxu0 0.0
    %1016 = vmatprep.subr.mxu0 0.0
    %1017 = vmatpush1.xpose.msra.mxu0 0.0
    %1018 = vmatprep.subr.mxu0 0.0
    %1019 = vmatpush1.xpose.msra.mxu0 0.0
    %1020 = vmatprep.subr.mxu0 0.0
    %1021 = vmatpush1.xpose.msra.mxu0 0.0
    %1022 = vmatprep.subr.mxu0 0.0
    %1023 = vmatpush1.xpose.msra.mxu0 0.0
    %1024 = vmatprep.subr.mxu0 0.0
    %1025 = vmatpush1.xpose.msra.mxu0 0.0
    %1026 = vmatprep.subr.mxu0 0.0
    %1027 = vmatpush1.xpose.msra.mxu0 0.0
    %1028 = vmatprep.subr.mxu0 0.0
    %1029 = vmatpush1.xpose.msra.mxu0 0.0
    %1030 = vmatprep.subr.mxu0 0.0
    %1031 = vmatpush1.xpose.msra.mxu0 0.0
    %1032 = vmatprep.subr.mxu0 0.0
    %1033 = vmatpush1.xpose.msra.mxu0 0.0
    %1034 = vmatprep.subr.mxu0 0.0
    %1035 = vmatpush1.xpose.msra.mxu0 0.0
    %1036 = vmatprep.subr.mxu0 0.0
    %1037 = vmatpush1.xpose.msra.mxu0 0.0
    %1038 = vmatprep.subr.mxu0 0.0
    %1039 = vmatpush1.xpose.msra.mxu0 0.0
    %1040 = vmatprep.subr.mxu0 0.0
    %1041 = vmatpush1.xpose.msra.mxu0 0.0
    %1042 = vmatprep.subr.mxu0 0.0
    %1043 = vmatpush1.xpose.msra.mxu0 0.0
    %1044 = vmatprep.subr.mxu0 0.0
    %1045 = vmatpush1.xpose.msra.mxu0 0.0
    %1046 = vmatprep.subr.mxu0 0.0
    %1047 = vmatpush1.xpose.msra.mxu0 0.0
    %1048 = vmatprep.subr.mxu0 0.0
    %1049 = vmatpush1.xpose.msra.mxu0 0.0
    %1050 = vmatprep.mubr.f32.mxu0 0.0
    %1051 = vmatmul.mubr.f32.gmra.mrb[0].mxu0 %v978
    %v1052 = vpop.f32.mrb[0].mxu0
    %v1053 = vadd.f32 0.0, %v1052
    %v1054 = vpop.f32.mrb[0].mxu0
    %1055 = vmatprep.mubr.f32.mxu0 0.0
    %1056 = vmatmul.mubr.f32.gmra.mrb[0].mxu0 %v980
    %v1057 = vpop.f32.mrb[0].mxu0
    %v1058 = vadd.f32 0.0, %v1057
    %v1059 = vpop.f32.mrb[0].mxu0
    %1060 = vdwg.mxu0
    %v1061 = vsel %vm210, %v1053, -inf
    %1062 = vmax.xlane.f32.xlu0 %v1061
    %v1063 = vpop.xlane.xlu0 %1062
    %v1064 = vsel %vm214, %v1058, -inf
    %1065 = vmax.xlane.f32.xlu0 %v1064
    %v1066 = vpop.xlane.xlu0 %1065
    %v1067 = vsub.f32 %v1053, %v1063
    %v1068 = vsub.f32 %v1058, %v1066
    %v1069 = vmul.f32 %v1067, 1.442695
    %v1070 = vpow.pop %v1069
    %v1071 = vmul.f32 %v1068, 1.442695
    %v1072 = vpow.pop %v1071
    %v1073 = vsel %vm210, %v1070, 0.0
    %1074 = vadd.xlane.f32.xlu0 %v1073
    %v1075 = vpop.xlane.xlu0 %1074
    %v1076 = vsel %vm214, %v1072, 0.0
    %1077 = vadd.xlane.f32.xlu0 %v1076
    %v1078 = vpop.xlane.xlu0 %1077
    %v1079 = vrcp.pop %v1075
    %v1080 = vrcp.pop %v1078
    %v1081 = vmul.f32 %v1070, %v1079
    %v1082 = vmul.f32 %v1072, %v1080
    %1083 = vrot.lane.b32.xlu0 %v107, 40
    %v1084 = vpop.permute.xlu0 %1083
    %1085 = vrot.lane.b32.xlu0 %v112, 40
    %v1086 = vpop.permute.xlu0 %1085
    %v1089 = vsel %vm210, %v1081, 0
    %v1092 = vsel %vm210, %v1082, 0
    %v1094 = vsel %vm245, %v1086, 0
    %1096 = vmatprep.subr.mxu0 0.0
    %1097 = vmatpush1.msra.mxu0 %v1084
    %1098 = vmatprep.subr.mxu0 0.0
    %1099 = vmatpush1.msra.mxu0 %v1094
    %1100 = vmatprep.subr.mxu0 0.0
    %1101 = vmatpush1.msra.mxu0 0.0
    %1102 = vmatprep.subr.mxu0 0.0
    %1103 = vmatpush1.msra.mxu0 0.0
    %1104 = vmatprep.subr.mxu0 0.0
    %1105 = vmatpush1.msra.mxu0 0.0
    %1106 = vmatprep.subr.mxu0 0.0
    %1107 = vmatpush1.msra.mxu0 0.0
    %1108 = vmatprep.subr.mxu0 0.0
    %1109 = vmatpush1.msra.mxu0 0.0
    %1110 = vmatprep.subr.mxu0 0.0
    %1111 = vmatpush1.msra.mxu0 0.0
    %1112 = vmatprep.subr.mxu0 0.0
    %1113 = vmatpush1.msra.mxu0 0.0
    %1114 = vmatprep.subr.mxu0 0.0
    %1115 = vmatpush1.msra.mxu0 0.0
    %1116 = vmatprep.subr.mxu0 0.0
    %1117 = vmatpush1.msra.mxu0 0.0
    %1118 = vmatprep.subr.mxu0 0.0
    %1119 = vmatpush1.msra.mxu0 0.0
    %1120 = vmatprep.subr.mxu0 0.0
    %1121 = vmatpush1.msra.mxu0 0.0
    %1122 = vmatprep.subr.mxu0 0.0
    %1123 = vmatpush1.msra.mxu0 0.0
    %1124 = vmatprep.subr.mxu0 0.0
    %1125 = vmatpush1.msra.mxu0 0.0
    %1126 = vmatprep.subr.mxu0 0.0
    %1127 = vmatpush1.msra.mxu0 0.0
    %1128 = vmatprep.subr.mxu0 0.0
    %1129 = vmatpush1.msra.mxu0 0.0
    %1130 = vmatprep.subr.mxu0 0.0
    %1131 = vmatpush1.msra.mxu0 0.0
    %1132 = vmatprep.subr.mxu0 0.0
    %1133 = vmatpush1.msra.mxu0 0.0
    %1134 = vmatprep.subr.mxu0 0.0
    %1135 = vmatpush1.msra.mxu0 0.0
    %1136 = vmatprep.subr.mxu0 0.0
    %1137 = vmatpush1.msra.mxu0 0.0
    %1138 = vmatprep.subr.mxu0 0.0
    %1139 = vmatpush1.msra.mxu0 0.0
    %1140 = vmatprep.subr.mxu0 0.0
    %1141 = vmatpush1.msra.mxu0 0.0
    %1142 = vmatprep.subr.mxu0 0.0
    %1143 = vmatpush1.msra.mxu0 0.0
    %1144 = vmatprep.subr.mxu0 0.0
    %1145 = vmatpush1.msra.mxu0 0.0
    %1146 = vmatprep.subr.mxu0 0.0
    %1147 = vmatpush1.msra.mxu0 0.0
    %1148 = vmatprep.subr.mxu0 0.0
    %1149 = vmatpush1.msra.mxu0 0.0
    %1150 = vmatprep.subr.mxu0 0.0
    %1151 = vmatpush1.msra.mxu0 0.0
    %1152 = vmatprep.subr.mxu0 0.0
    %1153 = vmatpush1.msra.mxu0 0.0
    %1154 = vmatprep.subr.mxu0 0.0
    %1155 = vmatpush1.msra.mxu0 0.0
    %1156 = vmatprep.subr.mxu0 0.0
    %1157 = vmatpush1.msra.mxu0 0.0
    %1158 = vmatprep.subr.mxu0 0.0
    %1159 = vmatpush1.msra.mxu0 0.0
    %1160 = vmatprep.mubr.f32.mxu0 0.0
    %1161 = vmatmul.mubr.f32.gmra.mrb[0].mxu0 %v1089
    %v1162 = vpop.f32.mrb[0].mxu0
    %v1163 = vadd.f32 0.0, %v1162
    %v1164 = vpop.f32.mrb[0].mxu0
    %1165 = vmatprep.mubr.f32.mxu0 0.0
    %1166 = vmatmul.mubr.f32.gmra.mrb[0].mxu0 %v1092
    %v1167 = vpop.f32.mrb[0].mxu0
    %v1168 = vadd.f32 0.0, %v1167
    %v1169 = vpop.f32.mrb[0].mxu0
    %1170 = vdwg.mxu0
    %v1172 = vsel %vm126, %v1163, 0
    %v1175 = vsel %vm126, %v1168, 0
    %1177 = vmatprep.subr.mxu0 0.0
    %1178 = vmatpush1.msra.mxu0 %v28
    %1179 = vmatprep.subr.mxu0 0.0
    %1180 = vmatpush1.msra.mxu0 0.0
    %1181 = vmatprep.subr.mxu0 0.0
    %1182 = vmatpush1.msra.mxu0 0.0
    %1183 = vmatprep.subr.mxu0 0.0
    %1184 = vmatpush1.msra.mxu0 0.0
    %1185 = vmatprep.subr.mxu0 0.0
    %1186 = vmatpush1.msra.mxu0 0.0
    %1187 = vmatprep.subr.mxu0 0.0
    %1188 = vmatpush1.msra.mxu0 0.0
    %1189 = vmatprep.subr.mxu0 0.0
    %1190 = vmatpush1.msra.mxu0 0.0
    %1191 = vmatprep.subr.mxu0 0.0
    %1192 = vmatpush1.msra.mxu0 0.0
    %1193 = vmatprep.subr.mxu0 0.0
    %1194 = vmatpush1.msra.mxu0 0.0
    %1195 = vmatprep.subr.mxu0 0.0
    %1196 = vmatpush1.msra.mxu0 0.0
    %1197 = vmatprep.subr.mxu0 0.0
    %1198 = vmatpush1.msra.mxu0 0.0
    %1199 = vmatprep.subr.mxu0 0.0
    %1200 = vmatpush1.msra.mxu0 0.0
    %1201 = vmatprep.subr.mxu0 0.0
    %1202 = vmatpush1.msra.mxu0 0.0
    %1203 = vmatprep.subr.mxu0 0.0
    %1204 = vmatpush1.msra.mxu0 0.0
    %1205 = vmatprep.subr.mxu0 0.0
    %1206 = vmatpush1.msra.mxu0 0.0
    %1207 = vmatprep.subr.mxu0 0.0
    %1208 = vmatpush1.msra.mxu0 0.0
    %1209 = vmatprep.subr.mxu0 0.0
    %1210 = vmatpush1.msra.mxu0 0.0
    %1211 = vmatprep.subr.mxu0 0.0
    %1212 = vmatpush1.msra.mxu0 0.0
    %1213 = vmatprep.subr.mxu0 0.0
    %1214 = vmatpush1.msra.mxu0 0.0
    %1215 = vmatprep.subr.mxu0 0.0
    %1216 = vmatpush1.msra.mxu0 0.0
    %1217 = vmatprep.subr.mxu0 0.0
    %1218 = vmatpush1.msra.mxu0 0.0
    %1219 = vmatprep.subr.mxu0 0.0
    %1220 = vmatpush1.msra.mxu0 0.0
    %1221 = vmatprep.subr.mxu0 0.0
    %1222 = vmatpush1.msra.mxu0 0.0
    %1223 = vmatprep.subr.mxu0 0.0
    %1224 = vmatpush1.msra.mxu0 0.0
    %1225 = vmatprep.subr.mxu0 0.0
    %1226 = vmatpush1.msra.mxu0 0.0
    %1227 = vmatprep.subr.mxu0 0.0
    %1228 = vmatpush1.msra.mxu0 0.0
    %1229 = vmatprep.subr.mxu0 0.0
    %1230 = vmatpush1.msra.mxu0 0.0
    %1231 = vmatprep.subr.mxu0 0.0
    %1232 = vmatpush1.msra.mxu0 0.0
    %1233 = vmatprep.subr.mxu0 0.0
    %1234 = vmatpush1.msra.mxu0 0.0
    %1235 = vmatprep.subr.mxu0 0.0
    %1236 = vmatpush1.msra.mxu0 0.0
    %1237 = vmatprep.subr.mxu0 0.0
    %1238 = vmatpush1.msra.mxu0 0.0
    %1239 = vmatprep.subr.mxu0 0.0
    %1240 = vmatpush1.msra.mxu0 0.0
    %1241 = vmatprep.mubr.f32.mxu0 0.0
    %1242 = vmatmul.mubr.f32.gmra.mrb[0].mxu0 %v1172
    %v1243 = vpop.f32.mrb[0].mxu0
    %v1244 = vadd.f32 0.0, %v1243
    %v1245 = vpop.f32.mrb[0].mxu0
    %1246 = vmatprep.mubr.f32.mxu0 0.0
    %1247 = vmatmul.mubr.f32.gmra.mrb[0].mxu0 %v1175
    %v1248 = vpop.f32.mrb[0].mxu0
    %v1249 = vadd.f32 0.0, %v1248
    %v1250 = vpop.f32.mrb[0].mxu0
    %1251 = vdwg.mxu0
    %v1252 = vadd.f32 %v968, %v1244
    %v1253 = vadd.f32 %v969, %v1249
    %v1255 = vlaneseq
    %v1256 = vshrl.u32 %v1255, 7
    %v1257 = vsub.s32 0, %v1256
    %v1258 = vrot.slane %v29, %v1257
    %v1260 = vadd.f32 %v1252, %v1258
    %v1261 = vadd.f32 %v1253, %v1258
    %v1263 = vrot.slane %v112, 4
    %v1264 = vrot.slane %v117, 4
    %v1265 = vsel %vm245, %v1263, %v1264
    %1266 = vrot.lane.b32.xlu0 %v1265, 96
    %v1267 = vpop.permute.xlu0 %1266
    %1268 = vrot.lane.b32.xlu0 %v1264, 96
    %v1269 = vpop.permute.xlu0 %1268
    %v1270 = vsel %vm126, %v1265, 0
    %v1272 = vsel %vm126, %v1264, 0
    %v1274 = vsel %vm126, %v1267, 0
    %v1276 = vsel %vm126, %v1269, 0
    %1278 = vmatprep.subr.mxu0 0.0
    %1279 = vmatpush1.xpose.msra.mxu0 %v1274
    %1280 = vmatprep.subr.mxu0 0.0
    %1281 = vmatpush1.xpose.msra.mxu0 %v1276
    %1282 = vmatprep.subr.mxu0 0.0
    %1283 = vmatpush1.xpose.msra.mxu0 0.0
    %1284 = vmatprep.subr.mxu0 0.0
    %1285 = vmatpush1.xpose.msra.mxu0 0.0
    %1286 = vmatprep.subr.mxu0 0.0
    %1287 = vmatpush1.xpose.msra.mxu0 0.0
    %1288 = vmatprep.subr.mxu0 0.0
    %1289 = vmatpush1.xpose.msra.mxu0 0.0
    %1290 = vmatprep.subr.mxu0 0.0
    %1291 = vmatpush1.xpose.msra.mxu0 0.0
    %1292 = vmatprep.subr.mxu0 0.0
    %1293 = vmatpush1.xpose.msra.mxu0 0.0
    %1294 = vmatprep.subr.mxu0 0.0
    %1295 = vmatpush1.xpose.msra.mxu0 0.0
    %1296 = vmatprep.subr.mxu0 0.0
    %1297 = vmatpush1.xpose.msra.mxu0 0.0
    %1298 = vmatprep.subr.mxu0 0.0
    %1299 = vmatpush1.xpose.msra.mxu0 0.0
    %1300 = vmatprep.subr.mxu0 0.0
    %1301 = vmatpush1.xpose.msra.mxu0 0.0
    %1302 = vmatprep.subr.mxu0 0.0
    %1303 = vmatpush1.xpose.msra.mxu0 0.0
    %1304 = vmatprep.subr.mxu0 0.0
    %1305 = vmatpush1.xpose.msra.mxu0 0.0
    %1306 = vmatprep.subr.mxu0 0.0
    %1307 = vmatpush1.xpose.msra.mxu0 0.0
    %1308 = vmatprep.subr.mxu0 0.0
    %1309 = vmatpush1.xpose.msra.mxu0 0.0
    %1310 = vmatprep.subr.mxu0 0.0
    %1311 = vmatpush1.xpose.msra.mxu0 0.0
    %1312 = vmatprep.subr.mxu0 0.0
    %1313 = vmatpush1.xpose.msra.mxu0 0.0
    %1314 = vmatprep.subr.mxu0 0.0
    %1315 = vmatpush1.xpose.msra.mxu0 0.0
    %1316 = vmatprep.subr.mxu0 0.0
    %1317 = vmatpush1.xpose.msra.mxu0 0.0
    %1318 = vmatprep.subr.mxu0 0.0
    %1319 = vmatpush1.xpose.msra.mxu0 0.0
    %1320 = vmatprep.subr.mxu0 0.0
    %1321 = vmatpush1.xpose.msra.mxu0 0.0
    %1322 = vmatprep.subr.mxu0 0.0
    %1323 = vmatpush1.xpose.msra.mxu0 0.0
    %1324 = vmatprep.subr.mxu0 0.0
    %1325 = vmatpush1.xpose.msra.mxu0 0.0
    %1326 = vmatprep.subr.mxu0 0.0
    %1327 = vmatpush1.xpose.msra.mxu0 0.0
    %1328 = vmatprep.subr.mxu0 0.0
    %1329 = vmatpush1.xpose.msra.mxu0 0.0
    %1330 = vmatprep.subr.mxu0 0.0
    %1331 = vmatpush1.xpose.msra.mxu0 0.0
    %1332 = vmatprep.subr.mxu0 0.0
    %1333 = vmatpush1.xpose.msra.mxu0 0.0
    %1334 = vmatprep.subr.mxu0 0.0
    %1335 = vmatpush1.xpose.msra.mxu0 0.0
    %1336 = vmatprep.subr.mxu0 0.0
    %1337 = vmatpush1.xpose.msra.mxu0 0.0
    %1338 = vmatprep.subr.mxu0 0.0
    %1339 = vmatpush1.xpose.msra.mxu0 0.0
    %1340 = vmatprep.subr.mxu0 0.0
    %1341 = vmatpush1.xpose.msra.mxu0 0.0
    %1342 = vmatprep.mubr.f32.mxu0 0.0
    %1343 = vmatmul.mubr.f32.gmra.mrb[0].mxu0 %v1270
    %v1344 = vpop.f32.mrb[0].mxu0
    %v1345 = vadd.f32 0.0, %v1344
    %v1346 = vpop.f32.mrb[0].mxu0
    %1347 = vmatprep.mubr.f32.mxu0 0.0
    %1348 = vmatmul.mubr.f32.gmra.mrb[0].mxu0 %v1272
    %v1349 = vpop.f32.mrb[0].mxu0
    %v1350 = vadd.f32 0.0, %v1349
    %v1351 = vpop.f32.mrb[0].mxu0
    %1352 = vdwg.mxu0
    %v1353 = vsel %vm210, %v1345, -inf
    %1354 = vmax.xlane.f32.xlu0 %v1353
    %v1355 = vpop.xlane.xlu0 %1354
    %v1356 = vsel %vm214, %v1350, -inf
    %1357 = vmax.xlane.f32.xlu0 %v1356
    %v1358 = vpop.xlane.xlu0 %1357
    %v1359 = vsub.f32 %v1345, %v1355
    %v1360 = vsub.f32 %v1350, %v1358
    %v1361 = vmul.f32 %v1359, 1.442695
    %v1362 = vpow.pop %v1361
    %v1363 = vmul.f32 %v1360, 1.442695
    %v1364 = vpow.pop %v1363
    %v1365 = vsel %vm210, %v1362, 0.0
    %1366 = vadd.xlane.f32.xlu0 %v1365
    %v1367 = vpop.xlane.xlu0 %1366
    %v1368 = vsel %vm214, %v1364, 0.0
    %1369 = vadd.xlane.f32.xlu0 %v1368
    %v1370 = vpop.xlane.xlu0 %1369
    %v1371 = vrcp.pop %v1367
    %v1372 = vrcp.pop %v1370
    %v1373 = vmul.f32 %v1362, %v1371
    %v1374 = vmul.f32 %v1364, %v1372
    %1375 = vrot.lane.b32.xlu0 %v1265, 64
    %v1376 = vpop.permute.xlu0 %1375
    %1377 = vrot.lane.b32.xlu0 %v1264, 64
    %v1378 = vpop.permute.xlu0 %1377
    %v1381 = vsel %vm210, %v1373, 0
    %v1384 = vsel %vm210, %v1374, 0
    %v1386 = vsel %vm245, %v1378, 0
    %1388 = vmatprep.subr.mxu0 0.0
    %1389 = vmatpush1.msra.mxu0 %v1376
    %1390 = vmatprep.subr.mxu0 0.0
    %1391 = vmatpush1.msra.mxu0 %v1386
    %1392 = vmatprep.subr.mxu0 0.0
    %1393 = vmatpush1.msra.mxu0 0.0
    %1394 = vmatprep.subr.mxu0 0.0
    %1395 = vmatpush1.msra.mxu0 0.0
    %1396 = vmatprep.subr.mxu0 0.0
    %1397 = vmatpush1.msra.mxu0 0.0
    %1398 = vmatprep.subr.mxu0 0.0
    %1399 = vmatpush1.msra.mxu0 0.0
    %1400 = vmatprep.subr.mxu0 0.0
    %1401 = vmatpush1.msra.mxu0 0.0
    %1402 = vmatprep.subr.mxu0 0.0
    %1403 = vmatpush1.msra.mxu0 0.0
    %1404 = vmatprep.subr.mxu0 0.0
    %1405 = vmatpush1.msra.mxu0 0.0
    %1406 = vmatprep.subr.mxu0 0.0
    %1407 = vmatpush1.msra.mxu0 0.0
    %1408 = vmatprep.subr.mxu0 0.0
    %1409 = vmatpush1.msra.mxu0 0.0
    %1410 = vmatprep.subr.mxu0 0.0
    %1411 = vmatpush1.msra.mxu0 0.0
    %1412 = vmatprep.subr.mxu0 0.0
    %1413 = vmatpush1.msra.mxu0 0.0
    %1414 = vmatprep.subr.mxu0 0.0
    %1415 = vmatpush1.msra.mxu0 0.0
    %1416 = vmatprep.subr.mxu0 0.0
    %1417 = vmatpush1.msra.mxu0 0.0
    %1418 = vmatprep.subr.mxu0 0.0
    %1419 = vmatpush1.msra.mxu0 0.0
    %1420 = vmatprep.subr.mxu0 0.0
    %1421 = vmatpush1.msra.mxu0 0.0
    %1422 = vmatprep.subr.mxu0 0.0
    %1423 = vmatpush1.msra.mxu0 0.0
    %1424 = vmatprep.subr.mxu0 0.0
    %1425 = vmatpush1.msra.mxu0 0.0
    %1426 = vmatprep.subr.mxu0 0.0
    %1427 = vmatpush1.msra.mxu0 0.0
    %1428 = vmatprep.subr.mxu0 0.0
    %1429 = vmatpush1.msra.mxu0 0.0
    %1430 = vmatprep.subr.mxu0 0.0
    %1431 = vmatpush1.msra.mxu0 0.0
    %1432 = vmatprep.subr.mxu0 0.0
    %1433 = vmatpush1.msra.mxu0 0.0
    %1434 = vmatprep.subr.mxu0 0.0
    %1435 = vmatpush1.msra.mxu0 0.0
    %1436 = vmatprep.subr.mxu0 0.0
    %1437 = vmatpush1.msra.mxu0 0.0
    %1438 = vmatprep.subr.mxu0 0.0
    %1439 = vmatpush1.msra.mxu0 0.0
    %1440 = vmatprep.subr.mxu0 0.0
    %1441 = vmatpush1.msra.mxu0 0.0
    %1442 = vmatprep.subr.mxu0 0.0
    %1443 = vmatpush1.msra.mxu0 0.0
    %1444 = vmatprep.subr.mxu0 0.0
    %1445 = vmatpush1.msra.mxu0 0.0
    %1446 = vmatprep.subr.mxu0 0.0
    %1447 = vmatpush1.msra.mxu0 0.0
    %1448 = vmatprep.subr.mxu0 0.0
    %1449 = vmatpush1.msra.mxu0 0.0
    %1450 = vmatprep.subr.mxu0 0.0
    %1451 = vmatpush1.msra.mxu0 0.0
    %1452 = vmatprep.mubr.f32.mxu0 0.0
    %1453 = vmatmul.mubr.f32.gmra.mrb[0].mxu0 %v1381
    %v1454 = vpop.f32.mrb[0].mxu0
    %v1455 = vadd.f32 0.0, %v1454
    %v1456 = vpop.f32.mrb[0].mxu0
    %1457 = vmatprep.mubr.f32.mxu0 0.0
    %1458 = vmatmul.mubr.f32.gmra.mrb[0].mxu0 %v1384
    %v1459 = vpop.f32.mrb[0].mxu0
    %v1460 = vadd.f32 0.0, %v1459
    %v1461 = vpop.f32.mrb[0].mxu0
    %1462 = vdwg.mxu0
    %1463 = vrot.lane.b32.xlu0 %v1265, 120
    %v1464 = vpop.permute.xlu0 %1463
    %1465 = vrot.lane.b32.xlu0 %v1264, 120
    %v1466 = vpop.permute.xlu0 %1465
    %1467 = vrot.lane.b32.xlu0 %v1265, 88
    %v1468 = vpop.permute.xlu0 %1467
    %1469 = vrot.lane.b32.xlu0 %v1264, 88
    %v1470 = vpop.permute.xlu0 %1469
    %v1471 = vsel %vm126, %v1464, 0
    %v1473 = vsel %vm126, %v1466, 0
    %v1475 = vsel %vm126, %v1468, 0
    %v1477 = vsel %vm126, %v1470, 0
    %1479 = vmatprep.subr.mxu0 0.0
    %1480 = vmatpush1.xpose.msra.mxu0 %v1475
    %1481 = vmatprep.subr.mxu0 0.0
    %1482 = vmatpush1.xpose.msra.mxu0 %v1477
    %1483 = vmatprep.subr.mxu0 0.0
    %1484 = vmatpush1.xpose.msra.mxu0 0.0
    %1485 = vmatprep.subr.mxu0 0.0
    %1486 = vmatpush1.xpose.msra.mxu0 0.0
    %1487 = vmatprep.subr.mxu0 0.0
    %1488 = vmatpush1.xpose.msra.mxu0 0.0
    %1489 = vmatprep.subr.mxu0 0.0
    %1490 = vmatpush1.xpose.msra.mxu0 0.0
    %1491 = vmatprep.subr.mxu0 0.0
    %1492 = vmatpush1.xpose.msra.mxu0 0.0
    %1493 = vmatprep.subr.mxu0 0.0
    %1494 = vmatpush1.xpose.msra.mxu0 0.0
    %1495 = vmatprep.subr.mxu0 0.0
    %1496 = vmatpush1.xpose.msra.mxu0 0.0
    %1497 = vmatprep.subr.mxu0 0.0
    %1498 = vmatpush1.xpose.msra.mxu0 0.0
    %1499 = vmatprep.subr.mxu0 0.0
    %1500 = vmatpush1.xpose.msra.mxu0 0.0
    %1501 = vmatprep.subr.mxu0 0.0
    %1502 = vmatpush1.xpose.msra.mxu0 0.0
    %1503 = vmatprep.subr.mxu0 0.0
    %1504 = vmatpush1.xpose.msra.mxu0 0.0
    %1505 = vmatprep.subr.mxu0 0.0
    %1506 = vmatpush1.xpose.msra.mxu0 0.0
    %1507 = vmatprep.subr.mxu0 0.0
    %1508 = vmatpush1.xpose.msra.mxu0 0.0
    %1509 = vmatprep.subr.mxu0 0.0
    %1510 = vmatpush1.xpose.msra.mxu0 0.0
    %1511 = vmatprep.subr.mxu0 0.0
    %1512 = vmatpush1.xpose.msra.mxu0 0.0
    %1513 = vmatprep.subr.mxu0 0.0
    %1514 = vmatpush1.xpose.msra.mxu0 0.0
    %1515 = vmatprep.subr.mxu0 0.0
    %1516 = vmatpush1.xpose.msra.mxu0 0.0
    %1517 = vmatprep.subr.mxu0 0.0
    %1518 = vmatpush1.xpose.msra.mxu0 0.0
    %1519 = vmatprep.subr.mxu0 0.0
    %1520 = vmatpush1.xpose.msra.mxu0 0.0
    %1521 = vmatprep.subr.mxu0 0.0
    %1522 = vmatpush1.xpose.msra.mxu0 0.0
    %1523 = vmatprep.subr.mxu0 0.0
    %1524 = vmatpush1.xpose.msra.mxu0 0.0
    %1525 = vmatprep.subr.mxu0 0.0
    %1526 = vmatpush1.xpose.msra.mxu0 0.0
    %1527 = vmatprep.subr.mxu0 0.0
    %1528 = vmatpush1.xpose.msra.mxu0 0.0
    %1529 = vmatprep.subr.mxu0 0.0
    %1530 = vmatpush1.xpose.msra.mxu0 0.0
    %1531 = vmatprep.subr.mxu0 0.0
    %1532 = vmatpush1.xpose.msra.mxu0 0.0
    %1533 = vmatprep.subr.mxu0 0.0
    %1534 = vmatpush1.xpose.msra.mxu0 0.0
    %1535 = vmatprep.subr.mxu0 0.0
    %1536 = vmatpush1.xpose.msra.mxu0 0.0
    %1537 = vmatprep.subr.mxu0 0.0
    %1538 = vmatpush1.xpose.msra.mxu0 0.0
    %1539 = vmatprep.subr.mxu0 0.0
    %1540 = vmatpush1.xpose.msra.mxu0 0.0
    %1541 = vmatprep.subr.mxu0 0.0
    %1542 = vmatpush1.xpose.msra.mxu0 0.0
    %1543 = vmatprep.mubr.f32.mxu0 0.0
    %1544 = vmatmul.mubr.f32.gmra.mrb[0].mxu0 %v1471
    %v1545 = vpop.f32.mrb[0].mxu0
    %v1546 = vadd.f32 0.0, %v1545
    %v1547 = vpop.f32.mrb[0].mxu0
    %1548 = vmatprep.mubr.f32.mxu0 0.0
    %1549 = vmatmul.mubr.f32.gmra.mrb[0].mxu0 %v1473
    %v1550 = vpop.f32.mrb[0].mxu0
    %v1551 = vadd.f32 0.0, %v1550
    %v1552 = vpop.f32.mrb[0].mxu0
    %1553 = vdwg.mxu0
    %v1554 = vsel %vm210, %v1546, -inf
    %1555 = vmax.xlane.f32.xlu0 %v1554
    %v1556 = vpop.xlane.xlu0 %1555
    %v1557 = vsel %vm214, %v1551, -inf
    %1558 = vmax.xlane.f32.xlu0 %v1557
    %v1559 = vpop.xlane.xlu0 %1558
    %v1560 = vsub.f32 %v1546, %v1556
    %v1561 = vsub.f32 %v1551, %v1559
    %v1562 = vmul.f32 %v1560, 1.442695
    %v1563 = vpow.pop %v1562
    %v1564 = vmul.f32 %v1561, 1.442695
    %v1565 = vpow.pop %v1564
    %v1566 = vsel %vm210, %v1563, 0.0
    %1567 = vadd.xlane.f32.xlu0 %v1566
    %v1568 = vpop.xlane.xlu0 %1567
    %v1569 = vsel %vm214, %v1565, 0.0
    %1570 = vadd.xlane.f32.xlu0 %v1569
    %v1571 = vpop.xlane.xlu0 %1570
    %v1572 = vrcp.pop %v1568
    %v1573 = vrcp.pop %v1571
    %v1574 = vmul.f32 %v1563, %v1572
    %v1575 = vmul.f32 %v1565, %v1573
    %1576 = vrot.lane.b32.xlu0 %v1265, 56
    %v1577 = vpop.permute.xlu0 %1576
    %1578 = vrot.lane.b32.xlu0 %v1264, 56
    %v1579 = vpop.permute.xlu0 %1578
    %v1582 = vsel %vm210, %v1574, 0
    %v1585 = vsel %vm210, %v1575, 0
    %v1587 = vsel %vm245, %v1579, 0
    %1589 = vmatprep.subr.mxu0 0.0
    %1590 = vmatpush1.msra.mxu0 %v1577
    %1591 = vmatprep.subr.mxu0 0.0
    %1592 = vmatpush1.msra.mxu0 %v1587
    %1593 = vmatprep.subr.mxu0 0.0
    %1594 = vmatpush1.msra.mxu0 0.0
    %1595 = vmatprep.subr.mxu0 0.0
    %1596 = vmatpush1.msra.mxu0 0.0
    %1597 = vmatprep.subr.mxu0 0.0
    %1598 = vmatpush1.msra.mxu0 0.0
    %1599 = vmatprep.subr.mxu0 0.0
    %1600 = vmatpush1.msra.mxu0 0.0
    %1601 = vmatprep.subr.mxu0 0.0
    %1602 = vmatpush1.msra.mxu0 0.0
    %1603 = vmatprep.subr.mxu0 0.0
    %1604 = vmatpush1.msra.mxu0 0.0
    %1605 = vmatprep.subr.mxu0 0.0
    %1606 = vmatpush1.msra.mxu0 0.0
    %1607 = vmatprep.subr.mxu0 0.0
    %1608 = vmatpush1.msra.mxu0 0.0
    %1609 = vmatprep.subr.mxu0 0.0
    %1610 = vmatpush1.msra.mxu0 0.0
    %1611 = vmatprep.subr.mxu0 0.0
    %1612 = vmatpush1.msra.mxu0 0.0
    %1613 = vmatprep.subr.mxu0 0.0
    %1614 = vmatpush1.msra.mxu0 0.0
    %1615 = vmatprep.subr.mxu0 0.0
    %1616 = vmatpush1.msra.mxu0 0.0
    %1617 = vmatprep.subr.mxu0 0.0
    %1618 = vmatpush1.msra.mxu0 0.0
    %1619 = vmatprep.subr.mxu0 0.0
    %1620 = vmatpush1.msra.mxu0 0.0
    %1621 = vmatprep.subr.mxu0 0.0
    %1622 = vmatpush1.msra.mxu0 0.0
    %1623 = vmatprep.subr.mxu0 0.0
    %1624 = vmatpush1.msra.mxu0 0.0
    %1625 = vmatprep.subr.mxu0 0.0
    %1626 = vmatpush1.msra.mxu0 0.0
    %1627 = vmatprep.subr.mxu0 0.0
    %1628 = vmatpush1.msra.mxu0 0.0
    %1629 = vmatprep.subr.mxu0 0.0
    %1630 = vmatpush1.msra.mxu0 0.0
    %1631 = vmatprep.subr.mxu0 0.0
    %1632 = vmatpush1.msra.mxu0 0.0
    %1633 = vmatprep.subr.mxu0 0.0
    %1634 = vmatpush1.msra.mxu0 0.0
    %1635 = vmatprep.subr.mxu0 0.0
    %1636 = vmatpush1.msra.mxu0 0.0
    %1637 = vmatprep.subr.mxu0 0.0
    %1638 = vmatpush1.msra.mxu0 0.0
    %1639 = vmatprep.subr.mxu0 0.0
    %1640 = vmatpush1.msra.mxu0 0.0
    %1641 = vmatprep.subr.mxu0 0.0
    %1642 = vmatpush1.msra.mxu0 0.0
    %1643 = vmatprep.subr.mxu0 0.0
    %1644 = vmatpush1.msra.mxu0 0.0
    %1645 = vmatprep.subr.mxu0 0.0
    %1646 = vmatpush1.msra.mxu0 0.0
    %1647 = vmatprep.subr.mxu0 0.0
    %1648 = vmatpush1.msra.mxu0 0.0
    %1649 = vmatprep.subr.mxu0 0.0
    %1650 = vmatpush1.msra.mxu0 0.0
    %1651 = vmatprep.subr.mxu0 0.0
    %1652 = vmatpush1.msra.mxu0 0.0
    %1653 = vmatprep.mubr.f32.mxu0 0.0
    %1654 = vmatmul.mubr.f32.gmra.mrb[0].mxu0 %v1582
    %v1655 = vpop.f32.mrb[0].mxu0
    %v1656 = vadd.f32 0.0, %v1655
    %v1657 = vpop.f32.mrb[0].mxu0
    %1658 = vmatprep.mubr.f32.mxu0 0.0
    %1659 = vmatmul.mubr.f32.gmra.mrb[0].mxu0 %v1585
    %v1660 = vpop.f32.mrb[0].mxu0
    %v1661 = vadd.f32 0.0, %v1660
    %v1662 = vpop.f32.mrb[0].mxu0
    %1663 = vdwg.mxu0
    %v1665 = vsel %vm126, %v1656, 0
    %v1668 = vsel %vm126, %v1661, 0
    %1670 = vmatprep.subr.mxu0 0.0
    %1671 = vmatpush1.msra.mxu0 %v26
    %1672 = vmatprep.subr.mxu0 0.0
    %1673 = vmatpush1.msra.mxu0 0.0
    %1674 = vmatprep.subr.mxu0 0.0
    %1675 = vmatpush1.msra.mxu0 0.0
    %1676 = vmatprep.subr.mxu0 0.0
    %1677 = vmatpush1.msra.mxu0 0.0
    %1678 = vmatprep.subr.mxu0 0.0
    %1679 = vmatpush1.msra.mxu0 0.0
    %1680 = vmatprep.subr.mxu0 0.0
    %1681 = vmatpush1.msra.mxu0 0.0
    %1682 = vmatprep.subr.mxu0 0.0
    %1683 = vmatpush1.msra.mxu0 0.0
    %1684 = vmatprep.subr.mxu0 0.0
    %1685 = vmatpush1.msra.mxu0 0.0
    %1686 = vmatprep.subr.mxu0 0.0
    %1687 = vmatpush1.msra.mxu0 0.0
    %1688 = vmatprep.subr.mxu0 0.0
    %1689 = vmatpush1.msra.mxu0 0.0
    %1690 = vmatprep.subr.mxu0 0.0
    %1691 = vmatpush1.msra.mxu0 0.0
    %1692 = vmatprep.subr.mxu0 0.0
    %1693 = vmatpush1.msra.mxu0 0.0
    %1694 = vmatprep.subr.mxu0 0.0
    %1695 = vmatpush1.msra.mxu0 0.0
    %1696 = vmatprep.subr.mxu0 0.0
    %1697 = vmatpush1.msra.mxu0 0.0
    %1698 = vmatprep.subr.mxu0 0.0
    %1699 = vmatpush1.msra.mxu0 0.0
    %1700 = vmatprep.subr.mxu0 0.0
    %1701 = vmatpush1.msra.mxu0 0.0
    %1702 = vmatprep.subr.mxu0 0.0
    %1703 = vmatpush1.msra.mxu0 0.0
    %1704 = vmatprep.subr.mxu0 0.0
    %1705 = vmatpush1.msra.mxu0 0.0
    %1706 = vmatprep.subr.mxu0 0.0
    %1707 = vmatpush1.msra.mxu0 0.0
    %1708 = vmatprep.subr.mxu0 0.0
    %1709 = vmatpush1.msra.mxu0 0.0
    %1710 = vmatprep.subr.mxu0 0.0
    %1711 = vmatpush1.msra.mxu0 0.0
    %1712 = vmatprep.subr.mxu0 0.0
    %1713 = vmatpush1.msra.mxu0 0.0
    %1714 = vmatprep.subr.mxu0 0.0
    %1715 = vmatpush1.msra.mxu0 0.0
    %1716 = vmatprep.subr.mxu0 0.0
    %1717 = vmatpush1.msra.mxu0 0.0
    %1718 = vmatprep.subr.mxu0 0.0
    %1719 = vmatpush1.msra.mxu0 0.0
    %1720 = vmatprep.subr.mxu0 0.0
    %1721 = vmatpush1.msra.mxu0 0.0
    %1722 = vmatprep.subr.mxu0 0.0
    %1723 = vmatpush1.msra.mxu0 0.0
    %1724 = vmatprep.subr.mxu0 0.0
    %1725 = vmatpush1.msra.mxu0 0.0
    %1726 = vmatprep.subr.mxu0 0.0
    %1727 = vmatpush1.msra.mxu0 0.0
    %1728 = vmatprep.subr.mxu0 0.0
    %1729 = vmatpush1.msra.mxu0 0.0
    %1730 = vmatprep.subr.mxu0 0.0
    %1731 = vmatpush1.msra.mxu0 0.0
    %1732 = vmatprep.subr.mxu0 0.0
    %1733 = vmatpush1.msra.mxu0 0.0
    %1734 = vmatprep.mubr.f32.mxu0 0.0
    %1735 = vmatmul.mubr.f32.gmra.mrb[0].mxu0 %v1665
    %v1736 = vpop.f32.mrb[0].mxu0
    %v1737 = vadd.f32 0.0, %v1736
    %v1738 = vpop.f32.mrb[0].mxu0
    %1739 = vmatprep.mubr.f32.mxu0 0.0
    %1740 = vmatmul.mubr.f32.gmra.mrb[0].mxu0 %v1668
    %v1741 = vpop.f32.mrb[0].mxu0
    %v1742 = vadd.f32 0.0, %v1741
    %v1743 = vpop.f32.mrb[0].mxu0
    %1744 = vdwg.mxu0
    %v1746 = vsel %vm126, %v1455, 0
    %v1749 = vsel %vm126, %v1460, 0
    %1751 = vmatprep.subr.mxu0 0.0
    %1752 = vmatpush1.msra.mxu0 %v25
    %1753 = vmatprep.subr.mxu0 0.0
    %1754 = vmatpush1.msra.mxu0 0.0
    %1755 = vmatprep.subr.mxu0 0.0
    %1756 = vmatpush1.msra.mxu0 0.0
    %1757 = vmatprep.subr.mxu0 0.0
    %1758 = vmatpush1.msra.mxu0 0.0
    %1759 = vmatprep.subr.mxu0 0.0
    %1760 = vmatpush1.msra.mxu0 0.0
    %1761 = vmatprep.subr.mxu0 0.0
    %1762 = vmatpush1.msra.mxu0 0.0
    %1763 = vmatprep.subr.mxu0 0.0
    %1764 = vmatpush1.msra.mxu0 0.0
    %1765 = vmatprep.subr.mxu0 0.0
    %1766 = vmatpush1.msra.mxu0 0.0
    %1767 = vmatprep.subr.mxu0 0.0
    %1768 = vmatpush1.msra.mxu0 0.0
    %1769 = vmatprep.subr.mxu0 0.0
    %1770 = vmatpush1.msra.mxu0 0.0
    %1771 = vmatprep.subr.mxu0 0.0
    %1772 = vmatpush1.msra.mxu0 0.0
    %1773 = vmatprep.subr.mxu0 0.0
    %1774 = vmatpush1.msra.mxu0 0.0
    %1775 = vmatprep.subr.mxu0 0.0
    %1776 = vmatpush1.msra.mxu0 0.0
    %1777 = vmatprep.subr.mxu0 0.0
    %1778 = vmatpush1.msra.mxu0 0.0
    %1779 = vmatprep.subr.mxu0 0.0
    %1780 = vmatpush1.msra.mxu0 0.0
    %1781 = vmatprep.subr.mxu0 0.0
    %1782 = vmatpush1.msra.mxu0 0.0
    %1783 = vmatprep.subr.mxu0 0.0
    %1784 = vmatpush1.msra.mxu0 0.0
    %1785 = vmatprep.subr.mxu0 0.0
    %1786 = vmatpush1.msra.mxu0 0.0
    %1787 = vmatprep.subr.mxu0 0.0
    %1788 = vmatpush1.msra.mxu0 0.0
    %1789 = vmatprep.subr.mxu0 0.0
    %1790 = vmatpush1.msra.mxu0 0.0
    %1791 = vmatprep.subr.mxu0 0.0
    %1792 = vmatpush1.msra.mxu0 0.0
    %1793 = vmatprep.subr.mxu0 0.0
    %1794 = vmatpush1.msra.mxu0 0.0
    %1795 = vmatprep.subr.mxu0 0.0
    %1796 = vmatpush1.msra.mxu0 0.0
    %1797 = vmatprep.subr.mxu0 0.0
    %1798 = vmatpush1.msra.mxu0 0.0
    %1799 = vmatprep.subr.mxu0 0.0
    %1800 = vmatpush1.msra.mxu0 0.0
    %1801 = vmatprep.subr.mxu0 0.0
    %1802 = vmatpush1.msra.mxu0 0.0
    %1803 = vmatprep.subr.mxu0 0.0
    %1804 = vmatpush1.msra.mxu0 0.0
    %1805 = vmatprep.subr.mxu0 0.0
    %1806 = vmatpush1.msra.mxu0 0.0
    %1807 = vmatprep.subr.mxu0 0.0
    %1808 = vmatpush1.msra.mxu0 0.0
    %1809 = vmatprep.subr.mxu0 0.0
    %1810 = vmatpush1.msra.mxu0 0.0
    %1811 = vmatprep.subr.mxu0 0.0
    %1812 = vmatpush1.msra.mxu0 0.0
    %1813 = vmatprep.subr.mxu0 0.0
    %1814 = vmatpush1.msra.mxu0 0.0
    %1815 = vmatprep.mubr.f32.mxu0 0.0
    %1816 = vmatmul.mubr.f32.gmra.mrb[0].mxu0 %v1746
    %v1817 = vpop.f32.mrb[0].mxu0
    %v1818 = vadd.f32 %v1737, %v1817
    %v1819 = vpop.f32.mrb[0].mxu0
    %1820 = vmatprep.mubr.f32.mxu0 0.0
    %1821 = vmatmul.mubr.f32.gmra.mrb[0].mxu0 %v1749
    %v1822 = vpop.f32.mrb[0].mxu0
    %v1823 = vadd.f32 %v1742, %v1822
    %v1824 = vpop.f32.mrb[0].mxu0
    %1825 = vdwg.mxu0
    %1826 = vrot.lane.b32.xlu0 %v1265, 112
    %v1827 = vpop.permute.xlu0 %1826
    %1828 = vrot.lane.b32.xlu0 %v1264, 112
    %v1829 = vpop.permute.xlu0 %1828
    %1830 = vrot.lane.b32.xlu0 %v1265, 80
    %v1831 = vpop.permute.xlu0 %1830
    %1832 = vrot.lane.b32.xlu0 %v1264, 80
    %v1833 = vpop.permute.xlu0 %1832
    %v1834 = vsel %vm126, %v1827, 0
    %v1836 = vsel %vm126, %v1829, 0
    %v1838 = vsel %vm126, %v1831, 0
    %v1840 = vsel %vm126, %v1833, 0
    %1842 = vmatprep.subr.mxu0 0.0
    %1843 = vmatpush1.xpose.msra.mxu0 %v1838
    %1844 = vmatprep.subr.mxu0 0.0
    %1845 = vmatpush1.xpose.msra.mxu0 %v1840
    %1846 = vmatprep.subr.mxu0 0.0
    %1847 = vmatpush1.xpose.msra.mxu0 0.0
    %1848 = vmatprep.subr.mxu0 0.0
    %1849 = vmatpush1.xpose.msra.mxu0 0.0
    %1850 = vmatprep.subr.mxu0 0.0
    %1851 = vmatpush1.xpose.msra.mxu0 0.0
    %1852 = vmatprep.subr.mxu0 0.0
    %1853 = vmatpush1.xpose.msra.mxu0 0.0
    %1854 = vmatprep.subr.mxu0 0.0
    %1855 = vmatpush1.xpose.msra.mxu0 0.0
    %1856 = vmatprep.subr.mxu0 0.0
    %1857 = vmatpush1.xpose.msra.mxu0 0.0
    %1858 = vmatprep.subr.mxu0 0.0
    %1859 = vmatpush1.xpose.msra.mxu0 0.0
    %1860 = vmatprep.subr.mxu0 0.0
    %1861 = vmatpush1.xpose.msra.mxu0 0.0
    %1862 = vmatprep.subr.mxu0 0.0
    %1863 = vmatpush1.xpose.msra.mxu0 0.0
    %1864 = vmatprep.subr.mxu0 0.0
    %1865 = vmatpush1.xpose.msra.mxu0 0.0
    %1866 = vmatprep.subr.mxu0 0.0
    %1867 = vmatpush1.xpose.msra.mxu0 0.0
    %1868 = vmatprep.subr.mxu0 0.0
    %1869 = vmatpush1.xpose.msra.mxu0 0.0
    %1870 = vmatprep.subr.mxu0 0.0
    %1871 = vmatpush1.xpose.msra.mxu0 0.0
    %1872 = vmatprep.subr.mxu0 0.0
    %1873 = vmatpush1.xpose.msra.mxu0 0.0
    %1874 = vmatprep.subr.mxu0 0.0
    %1875 = vmatpush1.xpose.msra.mxu0 0.0
    %1876 = vmatprep.subr.mxu0 0.0
    %1877 = vmatpush1.xpose.msra.mxu0 0.0
    %1878 = vmatprep.subr.mxu0 0.0
    %1879 = vmatpush1.xpose.msra.mxu0 0.0
    %1880 = vmatprep.subr.mxu0 0.0
    %1881 = vmatpush1.xpose.msra.mxu0 0.0
    %1882 = vmatprep.subr.mxu0 0.0
    %1883 = vmatpush1.xpose.msra.mxu0 0.0
    %1884 = vmatprep.subr.mxu0 0.0
    %1885 = vmatpush1.xpose.msra.mxu0 0.0
    %1886 = vmatprep.subr.mxu0 0.0
    %1887 = vmatpush1.xpose.msra.mxu0 0.0
    %1888 = vmatprep.subr.mxu0 0.0
    %1889 = vmatpush1.xpose.msra.mxu0 0.0
    %1890 = vmatprep.subr.mxu0 0.0
    %1891 = vmatpush1.xpose.msra.mxu0 0.0
    %1892 = vmatprep.subr.mxu0 0.0
    %1893 = vmatpush1.xpose.msra.mxu0 0.0
    %1894 = vmatprep.subr.mxu0 0.0
    %1895 = vmatpush1.xpose.msra.mxu0 0.0
    %1896 = vmatprep.subr.mxu0 0.0
    %1897 = vmatpush1.xpose.msra.mxu0 0.0
    %1898 = vmatprep.subr.mxu0 0.0
    %1899 = vmatpush1.xpose.msra.mxu0 0.0
    %1900 = vmatprep.subr.mxu0 0.0
    %1901 = vmatpush1.xpose.msra.mxu0 0.0
    %1902 = vmatprep.subr.mxu0 0.0
    %1903 = vmatpush1.xpose.msra.mxu0 0.0
    %1904 = vmatprep.subr.mxu0 0.0
    %1905 = vmatpush1.xpose.msra.mxu0 0.0
    %1906 = vmatprep.mubr.f32.mxu0 0.0
    %1907 = vmatmul.mubr.f32.gmra.mrb[0].mxu0 %v1834
    %v1908 = vpop.f32.mrb[0].mxu0
    %v1909 = vadd.f32 0.0, %v1908
    %v1910 = vpop.f32.mrb[0].mxu0
    %1911 = vmatprep.mubr.f32.mxu0 0.0
    %1912 = vmatmul.mubr.f32.gmra.mrb[0].mxu0 %v1836
    %v1913 = vpop.f32.mrb[0].mxu0
    %v1914 = vadd.f32 0.0, %v1913
    %v1915 = vpop.f32.mrb[0].mxu0
    %1916 = vdwg.mxu0
    %v1917 = vsel %vm210, %v1909, -inf
    %1918 = vmax.xlane.f32.xlu0 %v1917
    %v1919 = vpop.xlane.xlu0 %1918
    %v1920 = vsel %vm214, %v1914, -inf
    %1921 = vmax.xlane.f32.xlu0 %v1920
    %v1922 = vpop.xlane.xlu0 %1921
    %v1923 = vsub.f32 %v1909, %v1919
    %v1924 = vsub.f32 %v1914, %v1922
    %v1925 = vmul.f32 %v1923, 1.442695
    %v1926 = vpow.pop %v1925
    %v1927 = vmul.f32 %v1924, 1.442695
    %v1928 = vpow.pop %v1927
    %v1929 = vsel %vm210, %v1926, 0.0
    %1930 = vadd.xlane.f32.xlu0 %v1929
    %v1931 = vpop.xlane.xlu0 %1930
    %v1932 = vsel %vm214, %v1928, 0.0
    %1933 = vadd.xlane.f32.xlu0 %v1932
    %v1934 = vpop.xlane.xlu0 %1933
    %v1935 = vrcp.pop %v1931
    %v1936 = vrcp.pop %v1934
    %v1937 = vmul.f32 %v1926, %v1935
    %v1938 = vmul.f32 %v1928, %v1936
    %1939 = vrot.lane.b32.xlu0 %v1265, 48
    %v1940 = vpop.permute.xlu0 %1939
    %1941 = vrot.lane.b32.xlu0 %v1264, 48
    %v1942 = vpop.permute.xlu0 %1941
    %v1945 = vsel %vm210, %v1937, 0
    %v1948 = vsel %vm210, %v1938, 0
    %v1950 = vsel %vm245, %v1942, 0
    %1952 = vmatprep.subr.mxu0 0.0
    %1953 = vmatpush1.msra.mxu0 %v1940
    %1954 = vmatprep.subr.mxu0 0.0
    %1955 = vmatpush1.msra.mxu0 %v1950
    %1956 = vmatprep.subr.mxu0 0.0
    %1957 = vmatpush1.msra.mxu0 0.0
    %1958 = vmatprep.subr.mxu0 0.0
    %1959 = vmatpush1.msra.mxu0 0.0
    %1960 = vmatprep.subr.mxu0 0.0
    %1961 = vmatpush1.msra.mxu0 0.0
    %1962 = vmatprep.subr.mxu0 0.0
    %1963 = vmatpush1.msra.mxu0 0.0
    %1964 = vmatprep.subr.mxu0 0.0
    %1965 = vmatpush1.msra.mxu0 0.0
    %1966 = vmatprep.subr.mxu0 0.0
    %1967 = vmatpush1.msra.mxu0 0.0
    %1968 = vmatprep.subr.mxu0 0.0
    %1969 = vmatpush1.msra.mxu0 0.0
    %1970 = vmatprep.subr.mxu0 0.0
    %1971 = vmatpush1.msra.mxu0 0.0
    %1972 = vmatprep.subr.mxu0 0.0
    %1973 = vmatpush1.msra.mxu0 0.0
    %1974 = vmatprep.subr.mxu0 0.0
    %1975 = vmatpush1.msra.mxu0 0.0
    %1976 = vmatprep.subr.mxu0 0.0
    %1977 = vmatpush1.msra.mxu0 0.0
    %1978 = vmatprep.subr.mxu0 0.0
    %1979 = vmatpush1.msra.mxu0 0.0
    %1980 = vmatprep.subr.mxu0 0.0
    %1981 = vmatpush1.msra.mxu0 0.0
    %1982 = vmatprep.subr.mxu0 0.0
    %1983 = vmatpush1.msra.mxu0 0.0
    %1984 = vmatprep.subr.mxu0 0.0
    %1985 = vmatpush1.msra.mxu0 0.0
    %1986 = vmatprep.subr.mxu0 0.0
    %1987 = vmatpush1.msra.mxu0 0.0
    %1988 = vmatprep.subr.mxu0 0.0
    %1989 = vmatpush1.msra.mxu0 0.0
    %1990 = vmatprep.subr.mxu0 0.0
    %1991 = vmatpush1.msra.mxu0 0.0
    %1992 = vmatprep.subr.mxu0 0.0
    %1993 = vmatpush1.msra.mxu0 0.0
    %1994 = vmatprep.subr.mxu0 0.0
    %1995 = vmatpush1.msra.mxu0 0.0
    %1996 = vmatprep.subr.mxu0 0.0
    %1997 = vmatpush1.msra.mxu0 0.0
    %1998 = vmatprep.subr.mxu0 0.0
    %1999 = vmatpush1.msra.mxu0 0.0
    %2000 = vmatprep.subr.mxu0 0.0
    %2001 = vmatpush1.msra.mxu0 0.0
    %2002 = vmatprep.subr.mxu0 0.0
    %2003 = vmatpush1.msra.mxu0 0.0
    %2004 = vmatprep.subr.mxu0 0.0
    %2005 = vmatpush1.msra.mxu0 0.0
    %2006 = vmatprep.subr.mxu0 0.0
    %2007 = vmatpush1.msra.mxu0 0.0
    %2008 = vmatprep.subr.mxu0 0.0
    %2009 = vmatpush1.msra.mxu0 0.0
    %2010 = vmatprep.subr.mxu0 0.0
    %2011 = vmatpush1.msra.mxu0 0.0
    %2012 = vmatprep.subr.mxu0 0.0
    %2013 = vmatpush1.msra.mxu0 0.0
    %2014 = vmatprep.subr.mxu0 0.0
    %2015 = vmatpush1.msra.mxu0 0.0
    %2016 = vmatprep.mubr.f32.mxu0 0.0
    %2017 = vmatmul.mubr.f32.gmra.mrb[0].mxu0 %v1945
    %v2018 = vpop.f32.mrb[0].mxu0
    %v2019 = vadd.f32 0.0, %v2018
    %v2020 = vpop.f32.mrb[0].mxu0
    %2021 = vmatprep.mubr.f32.mxu0 0.0
    %2022 = vmatmul.mubr.f32.gmra.mrb[0].mxu0 %v1948
    %v2023 = vpop.f32.mrb[0].mxu0
    %v2024 = vadd.f32 0.0, %v2023
    %v2025 = vpop.f32.mrb[0].mxu0
    %2026 = vdwg.mxu0
    %v2028 = vsel %vm126, %v2019, 0
    %v2031 = vsel %vm126, %v2024, 0
    %2033 = vmatprep.subr.mxu0 0.0
    %2034 = vmatpush1.msra.mxu0 %v27
    %2035 = vmatprep.subr.mxu0 0.0
    %2036 = vmatpush1.msra.mxu0 0.0
    %2037 = vmatprep.subr.mxu0 0.0
    %2038 = vmatpush1.msra.mxu0 0.0
    %2039 = vmatprep.subr.mxu0 0.0
    %2040 = vmatpush1.msra.mxu0 0.0
    %2041 = vmatprep.subr.mxu0 0.0
    %2042 = vmatpush1.msra.mxu0 0.0
    %2043 = vmatprep.subr.mxu0 0.0
    %2044 = vmatpush1.msra.mxu0 0.0
    %2045 = vmatprep.subr.mxu0 0.0
    %2046 = vmatpush1.msra.mxu0 0.0
    %2047 = vmatprep.subr.mxu0 0.0
    %2048 = vmatpush1.msra.mxu0 0.0
    %2049 = vmatprep.subr.mxu0 0.0
    %2050 = vmatpush1.msra.mxu0 0.0
    %2051 = vmatprep.subr.mxu0 0.0
    %2052 = vmatpush1.msra.mxu0 0.0
    %2053 = vmatprep.subr.mxu0 0.0
    %2054 = vmatpush1.msra.mxu0 0.0
    %2055 = vmatprep.subr.mxu0 0.0
    %2056 = vmatpush1.msra.mxu0 0.0
    %2057 = vmatprep.subr.mxu0 0.0
    %2058 = vmatpush1.msra.mxu0 0.0
    %2059 = vmatprep.subr.mxu0 0.0
    %2060 = vmatpush1.msra.mxu0 0.0
    %2061 = vmatprep.subr.mxu0 0.0
    %2062 = vmatpush1.msra.mxu0 0.0
    %2063 = vmatprep.subr.mxu0 0.0
    %2064 = vmatpush1.msra.mxu0 0.0
    %2065 = vmatprep.subr.mxu0 0.0
    %2066 = vmatpush1.msra.mxu0 0.0
    %2067 = vmatprep.subr.mxu0 0.0
    %2068 = vmatpush1.msra.mxu0 0.0
    %2069 = vmatprep.subr.mxu0 0.0
    %2070 = vmatpush1.msra.mxu0 0.0
    %2071 = vmatprep.subr.mxu0 0.0
    %2072 = vmatpush1.msra.mxu0 0.0
    %2073 = vmatprep.subr.mxu0 0.0
    %2074 = vmatpush1.msra.mxu0 0.0
    %2075 = vmatprep.subr.mxu0 0.0
    %2076 = vmatpush1.msra.mxu0 0.0
    %2077 = vmatprep.subr.mxu0 0.0
    %2078 = vmatpush1.msra.mxu0 0.0
    %2079 = vmatprep.subr.mxu0 0.0
    %2080 = vmatpush1.msra.mxu0 0.0
    %2081 = vmatprep.subr.mxu0 0.0
    %2082 = vmatpush1.msra.mxu0 0.0
    %2083 = vmatprep.subr.mxu0 0.0
    %2084 = vmatpush1.msra.mxu0 0.0
    %2085 = vmatprep.subr.mxu0 0.0
    %2086 = vmatpush1.msra.mxu0 0.0
    %2087 = vmatprep.subr.mxu0 0.0
    %2088 = vmatpush1.msra.mxu0 0.0
    %2089 = vmatprep.subr.mxu0 0.0
    %2090 = vmatpush1.msra.mxu0 0.0
    %2091 = vmatprep.subr.mxu0 0.0
    %2092 = vmatpush1.msra.mxu0 0.0
    %2093 = vmatprep.subr.mxu0 0.0
    %2094 = vmatpush1.msra.mxu0 0.0
    %2095 = vmatprep.subr.mxu0 0.0
    %2096 = vmatpush1.msra.mxu0 0.0
    %2097 = vmatprep.mubr.f32.mxu0 0.0
    %2098 = vmatmul.mubr.f32.gmra.mrb[0].mxu0 %v2028
    %v2099 = vpop.f32.mrb[0].mxu0
    %v2100 = vadd.f32 0.0, %v2099
    %v2101 = vpop.f32.mrb[0].mxu0
    %2102 = vmatprep.mubr.f32.mxu0 0.0
    %2103 = vmatmul.mubr.f32.gmra.mrb[0].mxu0 %v2031
    %v2104 = vpop.f32.mrb[0].mxu0
    %v2105 = vadd.f32 0.0, %v2104
    %v2106 = vpop.f32.mrb[0].mxu0
    %2107 = vdwg.mxu0
    %v2108 = vadd.f32 %v1818, %v2100
    %v2109 = vadd.f32 %v1823, %v2105
    %2110 = vrot.lane.b32.xlu0 %v1265, 104
    %v2111 = vpop.permute.xlu0 %2110
    %2112 = vrot.lane.b32.xlu0 %v1264, 104
    %v2113 = vpop.permute.xlu0 %2112
    %2114 = vrot.lane.b32.xlu0 %v1265, 72
    %v2115 = vpop.permute.xlu0 %2114
    %2116 = vrot.lane.b32.xlu0 %v1264, 72
    %v2117 = vpop.permute.xlu0 %2116
    %v2118 = vsel %vm126, %v2111, 0
    %v2120 = vsel %vm126, %v2113, 0
    %v2122 = vsel %vm126, %v2115, 0
    %v2124 = vsel %vm126, %v2117, 0
    %2126 = vmatprep.subr.mxu0 0.0
    %2127 = vmatpush1.xpose.msra.mxu0 %v2122
    %2128 = vmatprep.subr.mxu0 0.0
    %2129 = vmatpush1.xpose.msra.mxu0 %v2124
    %2130 = vmatprep.subr.mxu0 0.0
    %2131 = vmatpush1.xpose.msra.mxu0 0.0
    %2132 = vmatprep.subr.mxu0 0.0
    %2133 = vmatpush1.xpose.msra.mxu0 0.0
    %2134 = vmatprep.subr.mxu0 0.0
    %2135 = vmatpush1.xpose.msra.mxu0 0.0
    %2136 = vmatprep.subr.mxu0 0.0
    %2137 = vmatpush1.xpose.msra.mxu0 0.0
    %2138 = vmatprep.subr.mxu0 0.0
    %2139 = vmatpush1.xpose.msra.mxu0 0.0
    %2140 = vmatprep.subr.mxu0 0.0
    %2141 = vmatpush1.xpose.msra.mxu0 0.0
    %2142 = vmatprep.subr.mxu0 0.0
    %2143 = vmatpush1.xpose.msra.mxu0 0.0
    %2144 = vmatprep.subr.mxu0 0.0
    %2145 = vmatpush1.xpose.msra.mxu0 0.0
    %2146 = vmatprep.subr.mxu0 0.0
    %2147 = vmatpush1.xpose.msra.mxu0 0.0
    %2148 = vmatprep.subr.mxu0 0.0
    %2149 = vmatpush1.xpose.msra.mxu0 0.0
    %2150 = vmatprep.subr.mxu0 0.0
    %2151 = vmatpush1.xpose.msra.mxu0 0.0
    %2152 = vmatprep.subr.mxu0 0.0
    %2153 = vmatpush1.xpose.msra.mxu0 0.0
    %2154 = vmatprep.subr.mxu0 0.0
    %2155 = vmatpush1.xpose.msra.mxu0 0.0
    %2156 = vmatprep.subr.mxu0 0.0
    %2157 = vmatpush1.xpose.msra.mxu0 0.0
    %2158 = vmatprep.subr.mxu0 0.0
    %2159 = vmatpush1.xpose.msra.mxu0 0.0
    %2160 = vmatprep.subr.mxu0 0.0
    %2161 = vmatpush1.xpose.msra.mxu0 0.0
    %2162 = vmatprep.subr.mxu0 0.0
    %2163 = vmatpush1.xpose.msra.mxu0 0.0
    %2164 = vmatprep.subr.mxu0 0.0
    %2165 = vmatpush1.xpose.msra.mxu0 0.0
    %2166 = vmatprep.subr.mxu0 0.0
    %2167 = vmatpush1.xpose.msra.mxu0 0.0
    %2168 = vmatprep.subr.mxu0 0.0
    %2169 = vmatpush1.xpose.msra.mxu0 0.0
    %2170 = vmatprep.subr.mxu0 0.0
    %2171 = vmatpush1.xpose.msra.mxu0 0.0
    %2172 = vmatprep.subr.mxu0 0.0
    %2173 = vmatpush1.xpose.msra.mxu0 0.0
    %2174 = vmatprep.subr.mxu0 0.0
    %2175 = vmatpush1.xpose.msra.mxu0 0.0
    %2176 = vmatprep.subr.mxu0 0.0
    %2177 = vmatpush1.xpose.msra.mxu0 0.0
    %2178 = vmatprep.subr.mxu0 0.0
    %2179 = vmatpush1.xpose.msra.mxu0 0.0
    %2180 = vmatprep.subr.mxu0 0.0
    %2181 = vmatpush1.xpose.msra.mxu0 0.0
    %2182 = vmatprep.subr.mxu0 0.0
    %2183 = vmatpush1.xpose.msra.mxu0 0.0
    %2184 = vmatprep.subr.mxu0 0.0
    %2185 = vmatpush1.xpose.msra.mxu0 0.0
    %2186 = vmatprep.subr.mxu0 0.0
    %2187 = vmatpush1.xpose.msra.mxu0 0.0
    %2188 = vmatprep.subr.mxu0 0.0
    %2189 = vmatpush1.xpose.msra.mxu0 0.0
    %2190 = vmatprep.mubr.f32.mxu0 0.0
    %2191 = vmatmul.mubr.f32.gmra.mrb[0].mxu0 %v2118
    %v2192 = vpop.f32.mrb[0].mxu0
    %v2193 = vadd.f32 0.0, %v2192
    %v2194 = vpop.f32.mrb[0].mxu0
    %2195 = vmatprep.mubr.f32.mxu0 0.0
    %2196 = vmatmul.mubr.f32.gmra.mrb[0].mxu0 %v2120
    %v2197 = vpop.f32.mrb[0].mxu0
    %v2198 = vadd.f32 0.0, %v2197
    %v2199 = vpop.f32.mrb[0].mxu0
    %2200 = vdwg.mxu0
    %v2201 = vsel %vm210, %v2193, -inf
    %2202 = vmax.xlane.f32.xlu0 %v2201
    %v2203 = vpop.xlane.xlu0 %2202
    %v2204 = vsel %vm214, %v2198, -inf
    %2205 = vmax.xlane.f32.xlu0 %v2204
    %v2206 = vpop.xlane.xlu0 %2205
    %v2207 = vsub.f32 %v2193, %v2203
    %v2208 = vsub.f32 %v2198, %v2206
    %v2209 = vmul.f32 %v2207, 1.442695
    %v2210 = vpow.pop %v2209
    %v2211 = vmul.f32 %v2208, 1.442695
    %v2212 = vpow.pop %v2211
    %v2213 = vsel %vm210, %v2210, 0.0
    %2214 = vadd.xlane.f32.xlu0 %v2213
    %v2215 = vpop.xlane.xlu0 %2214
    %v2216 = vsel %vm214, %v2212, 0.0
    %2217 = vadd.xlane.f32.xlu0 %v2216
    %v2218 = vpop.xlane.xlu0 %2217
    %v2219 = vrcp.pop %v2215
    %v2220 = vrcp.pop %v2218
    %v2221 = vmul.f32 %v2210, %v2219
    %v2222 = vmul.f32 %v2212, %v2220
    %2223 = vrot.lane.b32.xlu0 %v1265, 40
    %v2224 = vpop.permute.xlu0 %2223
    %2225 = vrot.lane.b32.xlu0 %v1264, 40
    %v2226 = vpop.permute.xlu0 %2225
    %v2229 = vsel %vm210, %v2221, 0
    %v2232 = vsel %vm210, %v2222, 0
    %v2234 = vsel %vm245, %v2226, 0
    %2236 = vmatprep.subr.mxu0 0.0
    %2237 = vmatpush1.msra.mxu0 %v2224
    %2238 = vmatprep.subr.mxu0 0.0
    %2239 = vmatpush1.msra.mxu0 %v2234
    %2240 = vmatprep.subr.mxu0 0.0
    %2241 = vmatpush1.msra.mxu0 0.0
    %2242 = vmatprep.subr.mxu0 0.0
    %2243 = vmatpush1.msra.mxu0 0.0
    %2244 = vmatprep.subr.mxu0 0.0
    %2245 = vmatpush1.msra.mxu0 0.0
    %2246 = vmatprep.subr.mxu0 0.0
    %2247 = vmatpush1.msra.mxu0 0.0
    %2248 = vmatprep.subr.mxu0 0.0
    %2249 = vmatpush1.msra.mxu0 0.0
    %2250 = vmatprep.subr.mxu0 0.0
    %2251 = vmatpush1.msra.mxu0 0.0
    %2252 = vmatprep.subr.mxu0 0.0
    %2253 = vmatpush1.msra.mxu0 0.0
    %2254 = vmatprep.subr.mxu0 0.0
    %2255 = vmatpush1.msra.mxu0 0.0
    %2256 = vmatprep.subr.mxu0 0.0
    %2257 = vmatpush1.msra.mxu0 0.0
    %2258 = vmatprep.subr.mxu0 0.0
    %2259 = vmatpush1.msra.mxu0 0.0
    %2260 = vmatprep.subr.mxu0 0.0
    %2261 = vmatpush1.msra.mxu0 0.0
    %2262 = vmatprep.subr.mxu0 0.0
    %2263 = vmatpush1.msra.mxu0 0.0
    %2264 = vmatprep.subr.mxu0 0.0
    %2265 = vmatpush1.msra.mxu0 0.0
    %2266 = vmatprep.subr.mxu0 0.0
    %2267 = vmatpush1.msra.mxu0 0.0
    %2268 = vmatprep.subr.mxu0 0.0
    %2269 = vmatpush1.msra.mxu0 0.0
    %2270 = vmatprep.subr.mxu0 0.0
    %2271 = vmatpush1.msra.mxu0 0.0
    %2272 = vmatprep.subr.mxu0 0.0
    %2273 = vmatpush1.msra.mxu0 0.0
    %2274 = vmatprep.subr.mxu0 0.0
    %2275 = vmatpush1.msra.mxu0 0.0
    %2276 = vmatprep.subr.mxu0 0.0
    %2277 = vmatpush1.msra.mxu0 0.0
    %2278 = vmatprep.subr.mxu0 0.0
    %2279 = vmatpush1.msra.mxu0 0.0
    %2280 = vmatprep.subr.mxu0 0.0
    %2281 = vmatpush1.msra.mxu0 0.0
    %2282 = vmatprep.subr.mxu0 0.0
    %2283 = vmatpush1.msra.mxu0 0.0
    %2284 = vmatprep.subr.mxu0 0.0
    %2285 = vmatpush1.msra.mxu0 0.0
    %2286 = vmatprep.subr.mxu0 0.0
    %2287 = vmatpush1.msra.mxu0 0.0
    %2288 = vmatprep.subr.mxu0 0.0
    %2289 = vmatpush1.msra.mxu0 0.0
    %2290 = vmatprep.subr.mxu0 0.0
    %2291 = vmatpush1.msra.mxu0 0.0
    %2292 = vmatprep.subr.mxu0 0.0
    %2293 = vmatpush1.msra.mxu0 0.0
    %2294 = vmatprep.subr.mxu0 0.0
    %2295 = vmatpush1.msra.mxu0 0.0
    %2296 = vmatprep.subr.mxu0 0.0
    %2297 = vmatpush1.msra.mxu0 0.0
    %2298 = vmatprep.subr.mxu0 0.0
    %2299 = vmatpush1.msra.mxu0 0.0
    %2300 = vmatprep.mubr.f32.mxu0 0.0
    %2301 = vmatmul.mubr.f32.gmra.mrb[0].mxu0 %v2229
    %v2302 = vpop.f32.mrb[0].mxu0
    %v2303 = vadd.f32 0.0, %v2302
    %v2304 = vpop.f32.mrb[0].mxu0
    %2305 = vmatprep.mubr.f32.mxu0 0.0
    %2306 = vmatmul.mubr.f32.gmra.mrb[0].mxu0 %v2232
    %v2307 = vpop.f32.mrb[0].mxu0
    %v2308 = vadd.f32 0.0, %v2307
    %v2309 = vpop.f32.mrb[0].mxu0
    %2310 = vdwg.mxu0
    %v2312 = vsel %vm126, %v2303, 0
    %v2315 = vsel %vm126, %v2308, 0
    %2317 = vmatprep.subr.mxu0 0.0
    %2318 = vmatpush1.msra.mxu0 %v28
    %2319 = vmatprep.subr.mxu0 0.0
    %2320 = vmatpush1.msra.mxu0 0.0
    %2321 = vmatprep.subr.mxu0 0.0
    %2322 = vmatpush1.msra.mxu0 0.0
    %2323 = vmatprep.subr.mxu0 0.0
    %2324 = vmatpush1.msra.mxu0 0.0
    %2325 = vmatprep.subr.mxu0 0.0
    %2326 = vmatpush1.msra.mxu0 0.0
    %2327 = vmatprep.subr.mxu0 0.0
    %2328 = vmatpush1.msra.mxu0 0.0
    %2329 = vmatprep.subr.mxu0 0.0
    %2330 = vmatpush1.msra.mxu0 0.0
    %2331 = vmatprep.subr.mxu0 0.0
    %2332 = vmatpush1.msra.mxu0 0.0
    %2333 = vmatprep.subr.mxu0 0.0
    %2334 = vmatpush1.msra.mxu0 0.0
    %2335 = vmatprep.subr.mxu0 0.0
    %2336 = vmatpush1.msra.mxu0 0.0
    %2337 = vmatprep.subr.mxu0 0.0
    %2338 = vmatpush1.msra.mxu0 0.0
    %2339 = vmatprep.subr.mxu0 0.0
    %2340 = vmatpush1.msra.mxu0 0.0
    %2341 = vmatprep.subr.mxu0 0.0
    %2342 = vmatpush1.msra.mxu0 0.0
    %2343 = vmatprep.subr.mxu0 0.0
    %2344 = vmatpush1.msra.mxu0 0.0
    %2345 = vmatprep.subr.mxu0 0.0
    %2346 = vmatpush1.msra.mxu0 0.0
    %2347 = vmatprep.subr.mxu0 0.0
    %2348 = vmatpush1.msra.mxu0 0.0
    %2349 = vmatprep.subr.mxu0 0.0
    %2350 = vmatpush1.msra.mxu0 0.0
    %2351 = vmatprep.subr.mxu0 0.0
    %2352 = vmatpush1.msra.mxu0 0.0
    %2353 = vmatprep.subr.mxu0 0.0
    %2354 = vmatpush1.msra.mxu0 0.0
    %2355 = vmatprep.subr.mxu0 0.0
    %2356 = vmatpush1.msra.mxu0 0.0
    %2357 = vmatprep.subr.mxu0 0.0
    %2358 = vmatpush1.msra.mxu0 0.0
    %2359 = vmatprep.subr.mxu0 0.0
    %2360 = vmatpush1.msra.mxu0 0.0
    %2361 = vmatprep.subr.mxu0 0.0
    %2362 = vmatpush1.msra.mxu0 0.0
    %2363 = vmatprep.subr.mxu0 0.0
    %2364 = vmatpush1.msra.mxu0 0.0
    %2365 = vmatprep.subr.mxu0 0.0
    %2366 = vmatpush1.msra.mxu0 0.0
    %2367 = vmatprep.subr.mxu0 0.0
    %2368 = vmatpush1.msra.mxu0 0.0
    %2369 = vmatprep.subr.mxu0 0.0
    %2370 = vmatpush1.msra.mxu0 0.0
    %2371 = vmatprep.subr.mxu0 0.0
    %2372 = vmatpush1.msra.mxu0 0.0
    %2373 = vmatprep.subr.mxu0 0.0
    %2374 = vmatpush1.msra.mxu0 0.0
    %2375 = vmatprep.subr.mxu0 0.0
    %2376 = vmatpush1.msra.mxu0 0.0
    %2377 = vmatprep.subr.mxu0 0.0
    %2378 = vmatpush1.msra.mxu0 0.0
    %2379 = vmatprep.subr.mxu0 0.0
    %2380 = vmatpush1.msra.mxu0 0.0
    %2381 = vmatprep.mubr.f32.mxu0 0.0
    %2382 = vmatmul.mubr.f32.gmra.mrb[0].mxu0 %v2312
    %v2383 = vpop.f32.mrb[0].mxu0
    %v2384 = vadd.f32 0.0, %v2383
    %v2385 = vpop.f32.mrb[0].mxu0
    %2386 = vmatprep.mubr.f32.mxu0 0.0
    %2387 = vmatmul.mubr.f32.gmra.mrb[0].mxu0 %v2315
    %v2388 = vpop.f32.mrb[0].mxu0
    %v2389 = vadd.f32 0.0, %v2388
    %v2390 = vpop.f32.mrb[0].mxu0
    %2391 = vdwg.mxu0
    %v2392 = vadd.f32 %v2108, %v2384
    %v2393 = vadd.f32 %v2109, %v2389
    %v2394 = vadd.f32 %v2392, %v1258
    %v2395 = vadd.f32 %v2393, %v1258
    %v2398 = vrot.slane %v1260, 4
    %v2399 = vrot.slane %v1261, 4
    %v2400 = vsel %vm245, %v2398, %v2399
    %v2404 = vrot.slane %v2394, 4
    %v2405 = vrot.slane %v2395, 4
    %v2406 = vsel %vm245, %v2404, %v2405
    %2408 = vst.msk [vmem:[#allocation2] sm:$0xff] %vm30, %v2400
    %2409 = vst.msk [vmem:[#allocation2 + $0x8] sm:$0xff] %vm30, %v2406
    // Predicated region
    $region18: #{forward.1} parent=1 // pred_check
      _
    $region19: #{forward.1} parent=1 // pred_check_branch
      %2411 = sbr.rel (0) target = $region21
    $region20: #{forward.1} parent=1 // pred_region
      %s2413 = ssub.s32 256, 256
      %2414 = vsyncadd [#allocation3], %s2413
      %s2415 = sshll.u32 [#allocation2], 4
      %s2416 = int_to_ptr.vmem [resolvable:$true] %s2415
      %2421 = dma.vmem_to_hbm [thread:$0]  %s2416, 256, %s4, [#allocation3], 128, 128, 8
    $region21: #{forward.1} parent=1 // pred_fallthru
      _
    // Predicated region
    $region22: #{forward.1} parent=1 // pred_check
      _
    $region23: #{forward.1} parent=1 // pred_check_branch
      %2423 = sbr.rel (0) target = $region25
    $region24: #{forward.1} parent=1 // pred_region
      %2424 = dma.done [#allocation3], 256
    $region25: #{forward.1} parent=1 // pred_fallthru
      _
    %2425 = vsyncpa [#allocation3], 1

</llo_original>
